<compile_context>
chip_gen: v7x
topology: tpu7x:2x2x1
jax: 0.10.0
libtpu: 0.0.40
codegen_flags: <defaults>
</compile_context>

<pallas_src>
import jax
import jax.numpy as jnp
from jax.experimental import pallas as pl
from jax.experimental.pallas import tpu as pltpu


# ----------------------------------------------------------------------------
# Synthetic architecture (mirrors the shapes implied by the PyTorch module).
# ----------------------------------------------------------------------------
LATENT_DIM = 32                     # hypernetwork.latent_dim
HYPER_HIDDEN = (64, 128)            # hypernetwork hidden layer sizes (logical)
LEAKY_SLOPE = 0.1                   # nn.LeakyReLU(0.1) used by the hypernetwork

# Function representation: coordinate_dim=2 -> [32, 32] -> feature_dim=3
FUNC_REP_LAYERS = [(32, 2), (32, 32), (3, 32)]   # (out_dim, in_dim) per layer

# Flat parameter layout per func-rep layer: [W_l (out*in), b_l (out)].
CHUNK_WIDTHS = []
for (_o, _i) in FUNC_REP_LAYERS:
    CHUNK_WIDTHS += [_o * _i, _o]
CHUNK_WIDTHS = tuple(CHUNK_WIDTHS)               # (64, 32, 1024, 32, 96, 3)
NUM_CHUNKS = len(CHUNK_WIDTHS)                   # 6
TOTAL_PARAMS = sum(CHUNK_WIDTHS)                 # 1251


def _round_up(x, m):
    return (x + m - 1) // m * m


# Lane-padded (physical) hypernet hidden widths used by the kernel.
H0_PAD = _round_up(HYPER_HIDDEN[0], 128)         # 64  -> 128
H1 = HYPER_HIDDEN[1]                             # 128 (already lane aligned)

MAX_TILE_B = 1024   # mem-bound sweet spot (512-1024 rows/step ~85% HBM roofline)
SUBLANE = 16        # bf16 sublane packing; also a multiple of f32's 8


def _pick_tile_b(batch, max_tile_b=MAX_TILE_B):
    """Batch tile: small batches get a batch-sized tile; large batches get
    512-1024-row tiles with >=2 grid steps so both v7x TensorCores get work."""
    b = _round_up(max(batch, 1), SUBLANE)
    n_tiles = -(-b // max_tile_b)
    if b >= 512:
        n_tiles = max(n_tiles, 2)
    return _round_up(-(-b // n_tiles), SUBLANE)


# ----------------------------------------------------------------------------
# Pallas kernel: fused 3-layer hypernetwork MLP + per-layer split on one
# batch tile:
#   h0 = leaky_relu(latents @ W0 + b0)
#   h1 = leaky_relu(h0     @ W1 + b1)
#   out_c = h1 @ W2_c + b2_c      for each of the 6 per-func-rep-layer chunks
# Weights fed as bf16 (MXU fast path), accumulation + VPU epilogue in f32,
# stores in out_dtype (bf16 by default -> halves the dominant HBM write).
# ----------------------------------------------------------------------------
def hypernet_mlp_kernel(lat_ref, w0_ref, b0_ref, w1_ref, b1_ref, *rest):
    wc_refs = rest[:NUM_CHUNKS]                      # W2 column chunks (bf16)
    bc_refs = rest[NUM_CHUNKS:2 * NUM_CHUNKS]        # b2 chunks (f32)
    out_refs = rest[2 * NUM_CHUNKS:3 * NUM_CHUNKS]   # per-chunk outputs

    x = lat_ref[...].astype(jnp.bfloat16)
    h = jnp.dot(x, w0_ref[...], preferred_element_type=jnp.float32) + b0_ref[...]
    h = jnp.maximum(h, LEAKY_SLOPE * h)              # LeakyReLU, slope in (0,1)
    h = jnp.dot(h.astype(jnp.bfloat16), w1_ref[...],
                preferred_element_type=jnp.float32) + b1_ref[...]
    h = jnp.maximum(h, LEAKY_SLOPE * h)
    hb = h.astype(jnp.bfloat16)
    for wc, bc, out in zip(wc_refs, bc_refs, out_refs):
        out[...] = (jnp.dot(hb, wc[...], preferred_element_type=jnp.float32)
                    + bc[...]).astype(out.dtype)


def hypernet_forward_pallas(latents, params, out_dtype=jnp.bfloat16,
                            max_tile_b=MAX_TILE_B):
    """Runs the fused, batch-tiled hypernetwork kernel.

    Args:
        latents: (batch, LATENT_DIM) float32.
        params: dict with w0,b0,w1,b1 (lane-padded; weights bf16, biases f32)
            and w2_chunks/b2_chunks (per-func-rep-layer column chunks).
        out_dtype: dtype of the emitted function-rep parameters (bf16 default;
            pass jnp.float32 if the downstream function-rep MLP needs f32).

    Returns:
        Tuple of 6 arrays, in flat order (w_l0, b_l0, w_l1, b_l1, w_l2, b_l2),
        each of shape (batch, chunk_width).
    """
    batch = latents.shape[0]
    tile_b = _pick_tile_b(batch, max_tile_b)
    batch_pad = _round_up(batch, tile_b)
    if batch_pad != batch:
        latents = jnp.pad(latents, ((0, batch_pad - batch), (0, 0)))

    grid = (batch_pad // tile_b,)

    out_bytes = jnp.dtype(out_dtype).itemsize
    flops = 2 * batch_pad * (LATENT_DIM * H0_PAD + H0_PAD * H1
                             + H1 * TOTAL_PARAMS)
    bytes_accessed = (
        batch_pad * (LATENT_DIM * 4 + TOTAL_PARAMS * out_bytes)   # in + out
        + 2 * (LATENT_DIM * H0_PAD + H0_PAD * H1 + H1 * TOTAL_PARAMS)  # bf16 W
        + 4 * (H0_PAD + H1 + TOTAL_PARAMS))                            # f32 b

    resident = lambda i: (0, 0)     # weights/biases stay resident across steps
    in_specs = (
        [pl.BlockSpec((tile_b, LATENT_DIM), lambda i: (i, 0))]        # latents
        + [pl.BlockSpec((LATENT_DIM, H0_PAD), resident),              # W0
           pl.BlockSpec((1, H0_PAD), resident),                       # b0
           pl.BlockSpec((H0_PAD, H1), resident),                      # W1
           pl.BlockSpec((1, H1), resident)]                           # b1
        + [pl.BlockSpec((H1, w), resident) for w in CHUNK_WIDTHS]     # W2 chunks
        + [pl.BlockSpec((1, w), resident) for w in CHUNK_WIDTHS])     # b2 chunks

    out_specs = tuple(pl.BlockSpec((tile_b, w), lambda i: (i, 0))
                      for w in CHUNK_WIDTHS)
    out_shape = tuple(jax.ShapeDtypeStruct((batch_pad, w), out_dtype)
                      for w in CHUNK_WIDTHS)

    outs = pl.pallas_call(
        hypernet_mlp_kernel,
        out_shape=out_shape,
        grid=grid,
        in_specs=in_specs,
        out_specs=out_specs,
        compiler_params=pltpu.CompilerParams(
            dimension_semantics=("parallel",),
            vmem_limit_bytes=32 * 1024 * 1024,
        ),
        cost_estimate=pl.CostEstimate(
            flops=flops, transcendentals=0, bytes_accessed=bytes_accessed),
    )(
        latents,
        params["w0"], params["b0"], params["w1"], params["b1"],
        *params["w2_chunks"], *params["b2_chunks"],
    )
    if batch_pad != batch:
        outs = tuple(o[:batch] for o in outs)
    return outs


def outputs_to_weights_and_biases(outs):
    """Glue: reshape the per-chunk kernel outputs into the PyTorch-style
    (all_weights, all_biases) lists.  Pure metadata reshapes — the kernel
    already wrote each layer's parameters contiguously, so no second HBM pass
    over the flat parameter slab is needed."""
    weights, biases = [], []
    for layer, (out_dim, in_dim) in enumerate(FUNC_REP_LAYERS):
        weights.append(outs[2 * layer].reshape(-1, out_dim, in_dim))
        biases.append(outs[2 * layer + 1])
    return weights, biases


# ----------------------------------------------------------------------------
# Deterministic parameter init (PyTorch-Linear-style uniform, fixed seed).
# Returns (kernel params, raw f32 params).  Kernel weights are lane-padded,
# bf16, with the last layer pre-split column-wise into the 6 output chunks.
# ----------------------------------------------------------------------------
def init_params(key):
    dims = [LATENT_DIM, HYPER_HIDDEN[0], HYPER_HIDDEN[1], TOTAL_PARAMS]
    keys = jax.random.split(key, 2 * (len(dims) - 1))
    raw = {}
    for layer, (d_in, d_out) in enumerate(zip(dims[:-1], dims[1:])):
        bound = 1.0 / float(d_in) ** 0.5
        raw[f"w{layer}"] = jax.random.uniform(
            keys[2 * layer], (d_in, d_out), minval=-bound, maxval=bound,
            dtype=jnp.float32)
        raw[f"b{layer}"] = jax.random.uniform(
            keys[2 * layer + 1], (1, d_out), minval=-bound, maxval=bound,
            dtype=jnp.float32)

    # Zero-pad hidden layer 0 from 64 -> 128 lanes (cols of W0/b0, rows of W1).
    # Padded activations are exactly 0 through LeakyReLU and contribute nothing.
    pad_h0 = H0_PAD - HYPER_HIDDEN[0]
    w2_chunks, b2_chunks = [], []
    off = 0
    for w in CHUNK_WIDTHS:
        w2_chunks.append(raw["w2"][:, off:off + w].astype(jnp.bfloat16))
        b2_chunks.append(raw["b2"][:, off:off + w])
        off += w

    params = {
        "w0": jnp.pad(raw["w0"], ((0, 0), (0, pad_h0))).astype(jnp.bfloat16),
        "b0": jnp.pad(raw["b0"], ((0, 0), (0, pad_h0))),
        "w1": jnp.pad(raw["w1"], ((0, pad_h0), (0, 0))).astype(jnp.bfloat16),
        "b1": raw["b1"],
        "w2_chunks": tuple(w2_chunks),
        "b2_chunks": tuple(b2_chunks),
    }
    return params, raw


# ----------------------------------------------------------------------------
# FunctionDistribution (JAX/Pallas version of the forward-relevant parts).
# ----------------------------------------------------------------------------
class FunctionDistributionPallas:
    def __init__(self, params, out_dtype=jnp.bfloat16):
        self.params = params
        self.latent_dim = LATENT_DIM
        self.out_dtype = out_dtype
        # latent_distribution is N(0, I) over latent_dim (used only for sampling)

    def forward(self, latents):
        """Returns (all_weights, all_biases) for each latent vector."""
        outs = hypernet_forward_pallas(latents, self.params,
                                       out_dtype=self.out_dtype)
        return outputs_to_weights_and_biases(outs)

    __call__ = forward

    def sample_prior(self, key, num_samples):
        return jax.random.normal(key, (num_samples, self.latent_dim),
                                 dtype=jnp.float32)

    # TODO(synk): latent_to_function / sample_function / sample_data /
    # latent_to_data / save_model manipulate Python FunctionRepresentation
    # objects and torch serialization; host-side glue, no Pallas equivalent.


# ----------------------------------------------------------------------------
# References for correctness checks.
# ----------------------------------------------------------------------------
def hypernet_forward_ref_quant(latents, params, out_dtype=jnp.bfloat16):
    """Pure-JAX reference mirroring the kernel's bf16/f32 math exactly."""
    h = jnp.dot(latents.astype(jnp.bfloat16), params["w0"],
                preferred_element_type=jnp.float32) + params["b0"]
    h = jnp.maximum(h, LEAKY_SLOPE * h)
    h = jnp.dot(h.astype(jnp.bfloat16), params["w1"],
                preferred_element_type=jnp.float32) + params["b1"]
    h = jnp.maximum(h, LEAKY_SLOPE * h)
    hb = h.astype(jnp.bfloat16)
    return tuple(
        (jnp.dot(hb, wc, preferred_element_type=jnp.float32) + bc).astype(out_dtype)
        for wc, bc in zip(params["w2_chunks"], params["b2_chunks"]))


def hypernet_forward_ref_f32(latents, raw):
    """Full-f32 reference on the un-padded weights (≈ the original torch
    module's math); documents the bf16 quantization error of the kernel."""
    h = latents @ raw["w0"] + raw["b0"]
    h = jnp.maximum(h, LEAKY_SLOPE * h)
    h = h @ raw["w1"] + raw["b1"]
    h = jnp.maximum(h, LEAKY_SLOPE * h)
    flat = h @ raw["w2"] + raw["b2"]
    outs, off = [], 0
    for w in CHUNK_WIDTHS:
        outs.append(flat[:, off:off + w])
        off += w
    return tuple(outs)


if __name__ == "__main__":
    key = jax.random.PRNGKey(0)
    k_param, k_lat = jax.random.split(key)

    params, raw = init_params(k_param)
    fdist = FunctionDistributionPallas(params)

    batch_size = 2
    latents = jax.random.normal(k_lat, (batch_size, LATENT_DIM),
                                dtype=jnp.float32)

    all_weights, all_biases = fdist.forward(latents)
    jax.block_until_ready(all_weights)
    jax.block_until_ready(all_biases)

    # Shape checks (PyTorch semantics: per-layer (batch, out, in) / (batch, out)).
    for (w, b), (out_dim, in_dim) in zip(zip(all_weights, all_biases),
                                         FUNC_REP_LAYERS):
        assert w.shape == (batch_size, out_dim, in_dim)
        assert b.shape == (batch_size, out_dim)

    # 1) Exact-math reference (same bf16 matmuls / f32 accumulation as kernel).
    ref_q = hypernet_forward_ref_quant(latents, params)
    rw_q, rb_q = outputs_to_weights_and_biases(ref_q)
    for w, rw in zip(all_weights, rw_q):
        assert jnp.allclose(w.astype(jnp.float32), rw.astype(jnp.float32),
                            atol=2e-2, rtol=2e-2)
    for b, rb in zip(all_biases, rb_q):
        assert jnp.allclose(b.astype(jnp.float32), rb.astype(jnp.float32),
                            atol=2e-2, rtol=2e-2)

    # 2) Full-f32 reference (documents bf16 error vs the original f32 module).
    ref_f = hypernet_forward_ref_f32(latents, raw)
    rw_f, rb_f = outputs_to_weights_and_biases(ref_f)
    for w, rw in zip(all_weights, rw_f):
        assert jnp.allclose(w.astype(jnp.float32), rw, atol=5e-2, rtol=5e-2)
    for b, rb in zip(all_biases, rb_f):
        assert jnp.allclose(b.astype(jnp.float32), rb, atol=5e-2, rtol=5e-2)

    print("KERNEL_OK")
</pallas_src>

<mosaic_0001>
module attributes {stable_mosaic.version = 11 : i64} {
  func.func @hypernet_mlp_kernel(%arg0: i32, %arg1: memref<16x32xf32, #tpu.memory_space<vmem>>, %arg2: memref<32x128xbf16, #tpu.memory_space<vmem>>, %arg3: memref<1x128xf32, #tpu.memory_space<vmem>>, %arg4: memref<128x128xbf16, #tpu.memory_space<vmem>>, %arg5: memref<1x128xf32, #tpu.memory_space<vmem>>, %arg6: memref<128x64xbf16, #tpu.memory_space<vmem>>, %arg7: memref<128x32xbf16, #tpu.memory_space<vmem>>, %arg8: memref<128x1024xbf16, #tpu.memory_space<vmem>>, %arg9: memref<128x32xbf16, #tpu.memory_space<vmem>>, %arg10: memref<128x96xbf16, #tpu.memory_space<vmem>>, %arg11: memref<128x3xbf16, #tpu.memory_space<vmem>>, %arg12: memref<1x64xf32, #tpu.memory_space<vmem>>, %arg13: memref<1x32xf32, #tpu.memory_space<vmem>>, %arg14: memref<1x1024xf32, #tpu.memory_space<vmem>>, %arg15: memref<1x32xf32, #tpu.memory_space<vmem>>, %arg16: memref<1x96xf32, #tpu.memory_space<vmem>>, %arg17: memref<1x3xf32, #tpu.memory_space<vmem>>, %arg18: memref<16x64xbf16, #tpu.memory_space<vmem>>, %arg19: memref<16x32xbf16, #tpu.memory_space<vmem>>, %arg20: memref<16x1024xbf16, #tpu.memory_space<vmem>>, %arg21: memref<16x32xbf16, #tpu.memory_space<vmem>>, %arg22: memref<16x96xbf16, #tpu.memory_space<vmem>>, %arg23: memref<16x3xbf16, #tpu.memory_space<vmem>>) attributes {dimension_semantics = [#tpu.dimension_semantics<parallel>], iteration_bounds = array<i64: 1>, scalar_prefetch = 0 : i64, scratch_operands = 0 : i64, tpu.core_type = #tpu.core_type<tc>, window_params = [{transform_indices = @transform_0, window_bounds = array<i64: 16, 32>}, {pipeline_mode = #tpu.pipeline_mode<synchronous>, transform_indices = @transform_1, window_bounds = array<i64: 32, 128>}, {pipeline_mode = #tpu.pipeline_mode<synchronous>, transform_indices = @transform_2, window_bounds = array<i64: 1, 128>}, {pipeline_mode = #tpu.pipeline_mode<synchronous>, transform_indices = @transform_3, window_bounds = array<i64: 128, 128>}, {pipeline_mode = #tpu.pipeline_mode<synchronous>, transform_indices = @transform_4, window_bounds = array<i64: 1, 128>}, {pipeline_mode = #tpu.pipeline_mode<synchronous>, transform_indices = @transform_5, window_bounds = array<i64: 128, 64>}, {pipeline_mode = #tpu.pipeline_mode<synchronous>, transform_indices = @transform_6, window_bounds = array<i64: 128, 32>}, {pipeline_mode = #tpu.pipeline_mode<synchronous>, transform_indices = @transform_7, window_bounds = array<i64: 128, 1024>}, {pipeline_mode = #tpu.pipeline_mode<synchronous>, transform_indices = @transform_8, window_bounds = array<i64: 128, 32>}, {pipeline_mode = #tpu.pipeline_mode<synchronous>, transform_indices = @transform_9, window_bounds = array<i64: 128, 96>}, {pipeline_mode = #tpu.pipeline_mode<synchronous>, transform_indices = @transform_10, window_bounds = array<i64: 128, 3>}, {pipeline_mode = #tpu.pipeline_mode<synchronous>, transform_indices = @transform_11, window_bounds = array<i64: 1, 64>}, {pipeline_mode = #tpu.pipeline_mode<synchronous>, transform_indices = @transform_12, window_bounds = array<i64: 1, 32>}, {pipeline_mode = #tpu.pipeline_mode<synchronous>, transform_indices = @transform_13, window_bounds = array<i64: 1, 1024>}, {pipeline_mode = #tpu.pipeline_mode<synchronous>, transform_indices = @transform_14, window_bounds = array<i64: 1, 32>}, {pipeline_mode = #tpu.pipeline_mode<synchronous>, transform_indices = @transform_15, window_bounds = array<i64: 1, 96>}, {pipeline_mode = #tpu.pipeline_mode<synchronous>, transform_indices = @transform_16, window_bounds = array<i64: 1, 3>}, {transform_indices = @transform_17, window_bounds = array<i64: 16, 64>}, {transform_indices = @transform_18, window_bounds = array<i64: 16, 32>}, {transform_indices = @transform_19, window_bounds = array<i64: 16, 1024>}, {transform_indices = @transform_20, window_bounds = array<i64: 16, 32>}, {transform_indices = @transform_21, window_bounds = array<i64: 16, 96>}, {transform_indices = @transform_22, window_bounds = array<i64: 16, 3>}]} {
    %c0 = arith.constant 0 : index
    %c0_0 = arith.constant 0 : index
    %0 = vector.load %arg1[%c0, %c0_0] : memref<16x32xf32, #tpu.memory_space<vmem>>, vector<16x32xf32>
    %1 = arith.truncf %0 : vector<16x32xf32> to vector<16x32xbf16>
    %c0_1 = arith.constant 0 : index
    %c0_2 = arith.constant 0 : index
    %2 = vector.load %arg2[%c0_1, %c0_2] : memref<32x128xbf16, #tpu.memory_space<vmem>>, vector<32x128xbf16>
    %cst = arith.constant dense<0.000000e+00> : vector<16x128xf32>
    %3 = tpu.matmul %1, %2, %cst {dimension_numbers = #tpu.dot_dimension_numbers<[1], [0], [0], [1], [0, 0, 1, 1], [], []>} : vector<16x32xbf16>, vector<32x128xbf16>, vector<16x128xf32> -> vector<16x128xf32>
    %c0_3 = arith.constant 0 : index
    %c0_4 = arith.constant 0 : index
    %4 = vector.load %arg3[%c0_3, %c0_4] : memref<1x128xf32, #tpu.memory_space<vmem>>, vector<1x128xf32>
    %5 = vector.broadcast %4 : vector<1x128xf32> to vector<16x128xf32>
    %6 = arith.addf %3, %5 : vector<16x128xf32>
    %cst_5 = arith.constant 1.000000e-01 : f32
    %7 = vector.broadcast %cst_5 : f32 to vector<16x128xf32>
    %8 = arith.mulf %7, %6 : vector<16x128xf32>
    %9 = arith.maximumf %6, %8 : vector<16x128xf32>
    %10 = arith.truncf %9 : vector<16x128xf32> to vector<16x128xbf16>
    %c0_6 = arith.constant 0 : index
    %c0_7 = arith.constant 0 : index
    %11 = vector.load %arg4[%c0_6, %c0_7] : memref<128x128xbf16, #tpu.memory_space<vmem>>, vector<128x128xbf16>
    %cst_8 = arith.constant dense<0.000000e+00> : vector<16x128xf32>
    %12 = tpu.matmul %10, %11, %cst_8 {dimension_numbers = #tpu.dot_dimension_numbers<[1], [0], [0], [1], [0, 0, 1, 1], [], []>} : vector<16x128xbf16>, vector<128x128xbf16>, vector<16x128xf32> -> vector<16x128xf32>
    %c0_9 = arith.constant 0 : index
    %c0_10 = arith.constant 0 : index
    %13 = vector.load %arg5[%c0_9, %c0_10] : memref<1x128xf32, #tpu.memory_space<vmem>>, vector<1x128xf32>
    %14 = vector.broadcast %13 : vector<1x128xf32> to vector<16x128xf32>
    %15 = arith.addf %12, %14 : vector<16x128xf32>
    %cst_11 = arith.constant 1.000000e-01 : f32
    %16 = vector.broadcast %cst_11 : f32 to vector<16x128xf32>
    %17 = arith.mulf %16, %15 : vector<16x128xf32>
    %18 = arith.maximumf %15, %17 : vector<16x128xf32>
    %19 = arith.truncf %18 : vector<16x128xf32> to vector<16x128xbf16>
    %c0_12 = arith.constant 0 : index
    %c0_13 = arith.constant 0 : index
    %20 = vector.load %arg6[%c0_12, %c0_13] : memref<128x64xbf16, #tpu.memory_space<vmem>>, vector<128x64xbf16>
    %cst_14 = arith.constant dense<0.000000e+00> : vector<16x64xf32>
    %21 = tpu.matmul %19, %20, %cst_14 {dimension_numbers = #tpu.dot_dimension_numbers<[1], [0], [0], [1], [0, 0, 1, 1], [], []>} : vector<16x128xbf16>, vector<128x64xbf16>, vector<16x64xf32> -> vector<16x64xf32>
    %c0_15 = arith.constant 0 : index
    %c0_16 = arith.constant 0 : index
    %22 = vector.load %arg12[%c0_15, %c0_16] : memref<1x64xf32, #tpu.memory_space<vmem>>, vector<1x64xf32>
    %23 = vector.broadcast %22 : vector<1x64xf32> to vector<16x64xf32>
    %24 = arith.addf %21, %23 : vector<16x64xf32>
    %25 = arith.truncf %24 : vector<16x64xf32> to vector<16x64xbf16>
    %c0_17 = arith.constant 0 : index
    %c0_18 = arith.constant 0 : index
    %26 = vector.load %arg18[%c0_17, %c0_18] : memref<16x64xbf16, #tpu.memory_space<vmem>>, vector<16x64xbf16>
    tpu.vector_store %arg18[%c0_17, %c0_18], %25 {strides = array<i32>} : memref<16x64xbf16, #tpu.memory_space<vmem>>, vector<16x64xbf16>,
    %c0_19 = arith.constant 0 : index
    %c0_20 = arith.constant 0 : index
    %27 = vector.load %arg7[%c0_19, %c0_20] : memref<128x32xbf16, #tpu.memory_space<vmem>>, vector<128x32xbf16>
    %cst_21 = arith.constant dense<0.000000e+00> : vector<16x32xf32>
    %28 = tpu.matmul %19, %27, %cst_21 {dimension_numbers = #tpu.dot_dimension_numbers<[1], [0], [0], [1], [0, 0, 1, 1], [], []>} : vector<16x128xbf16>, vector<128x32xbf16>, vector<16x32xf32> -> vector<16x32xf32>
    %c0_22 = arith.constant 0 : index
    %c0_23 = arith.constant 0 : index
    %29 = vector.load %arg13[%c0_22, %c0_23] : memref<1x32xf32, #tpu.memory_space<vmem>>, vector<1x32xf32>
    %30 = vector.broadcast %29 : vector<1x32xf32> to vector<16x32xf32>
    %31 = arith.addf %28, %30 : vector<16x32xf32>
    %32 = arith.truncf %31 : vector<16x32xf32> to vector<16x32xbf16>
    %c0_24 = arith.constant 0 : index
    %c0_25 = arith.constant 0 : index
    %33 = vector.load %arg19[%c0_24, %c0_25] : memref<16x32xbf16, #tpu.memory_space<vmem>>, vector<16x32xbf16>
    tpu.vector_store %arg19[%c0_24, %c0_25], %32 {strides = array<i32>} : memref<16x32xbf16, #tpu.memory_space<vmem>>, vector<16x32xbf16>,
    %c0_26 = arith.constant 0 : index
    %c0_27 = arith.constant 0 : index
    %34 = vector.load %arg8[%c0_26, %c0_27] : memref<128x1024xbf16, #tpu.memory_space<vmem>>, vector<128x1024xbf16>
    %cst_28 = arith.constant dense<0.000000e+00> : vector<16x1024xf32>
    %35 = tpu.matmul %19, %34, %cst_28 {dimension_numbers = #tpu.dot_dimension_numbers<[1], [0], [0], [1], [0, 0, 1, 1], [], []>} : vector<16x128xbf16>, vector<128x1024xbf16>, vector<16x1024xf32> -> vector<16x1024xf32>
    %c0_29 = arith.constant 0 : index
    %c0_30 = arith.constant 0 : index
    %36 = vector.load %arg14[%c0_29, %c0_30] : memref<1x1024xf32, #tpu.memory_space<vmem>>, vector<1x1024xf32>
    %37 = vector.broadcast %36 : vector<1x1024xf32> to vector<16x1024xf32>
    %38 = arith.addf %35, %37 : vector<16x1024xf32>
    %39 = arith.truncf %38 : vector<16x1024xf32> to vector<16x1024xbf16>
    %c0_31 = arith.constant 0 : index
    %c0_32 = arith.constant 0 : index
    %40 = vector.load %arg20[%c0_31, %c0_32] : memref<16x1024xbf16, #tpu.memory_space<vmem>>, vector<16x1024xbf16>
    tpu.vector_store %arg20[%c0_31, %c0_32], %39 {strides = array<i32>} : memref<16x1024xbf16, #tpu.memory_space<vmem>>, vector<16x1024xbf16>,
    %c0_33 = arith.constant 0 : index
    %c0_34 = arith.constant 0 : index
    %41 = vector.load %arg9[%c0_33, %c0_34] : memref<128x32xbf16, #tpu.memory_space<vmem>>, vector<128x32xbf16>
    %cst_35 = arith.constant dense<0.000000e+00> : vector<16x32xf32>
    %42 = tpu.matmul %19, %41, %cst_35 {dimension_numbers = #tpu.dot_dimension_numbers<[1], [0], [0], [1], [0, 0, 1, 1], [], []>} : vector<16x128xbf16>, vector<128x32xbf16>, vector<16x32xf32> -> vector<16x32xf32>
    %c0_36 = arith.constant 0 : index
    %c0_37 = arith.constant 0 : index
    %43 = vector.load %arg15[%c0_36, %c0_37] : memref<1x32xf32, #tpu.memory_space<vmem>>, vector<1x32xf32>
    %44 = vector.broadcast %43 : vector<1x32xf32> to vector<16x32xf32>
    %45 = arith.addf %42, %44 : vector<16x32xf32>
    %46 = arith.truncf %45 : vector<16x32xf32> to vector<16x32xbf16>
    %c0_38 = arith.constant 0 : index
    %c0_39 = arith.constant 0 : index
    %47 = vector.load %arg21[%c0_38, %c0_39] : memref<16x32xbf16, #tpu.memory_space<vmem>>, vector<16x32xbf16>
    tpu.vector_store %arg21[%c0_38, %c0_39], %46 {strides = array<i32>} : memref<16x32xbf16, #tpu.memory_space<vmem>>, vector<16x32xbf16>,
    %c0_40 = arith.constant 0 : index
    %c0_41 = arith.constant 0 : index
    %48 = vector.load %arg10[%c0_40, %c0_41] : memref<128x96xbf16, #tpu.memory_space<vmem>>, vector<128x96xbf16>
    %cst_42 = arith.constant dense<0.000000e+00> : vector<16x96xf32>
    %49 = tpu.matmul %19, %48, %cst_42 {dimension_numbers = #tpu.dot_dimension_numbers<[1], [0], [0], [1], [0, 0, 1, 1], [], []>} : vector<16x128xbf16>, vector<128x96xbf16>, vector<16x96xf32> -> vector<16x96xf32>
    %c0_43 = arith.constant 0 : index
    %c0_44 = arith.constant 0 : index
    %50 = vector.load %arg16[%c0_43, %c0_44] : memref<1x96xf32, #tpu.memory_space<vmem>>, vector<1x96xf32>
    %51 = vector.broadcast %50 : vector<1x96xf32> to vector<16x96xf32>
    %52 = arith.addf %49, %51 : vector<16x96xf32>
    %53 = arith.truncf %52 : vector<16x96xf32> to vector<16x96xbf16>
    %c0_45 = arith.constant 0 : index
    %c0_46 = arith.constant 0 : index
    %54 = vector.load %arg22[%c0_45, %c0_46] : memref<16x96xbf16, #tpu.memory_space<vmem>>, vector<16x96xbf16>
    tpu.vector_store %arg22[%c0_45, %c0_46], %53 {strides = array<i32>} : memref<16x96xbf16, #tpu.memory_space<vmem>>, vector<16x96xbf16>,
    %c0_47 = arith.constant 0 : index
    %c0_48 = arith.constant 0 : index
    %55 = vector.load %arg11[%c0_47, %c0_48] : memref<128x3xbf16, #tpu.memory_space<vmem>>, vector<128x3xbf16>
    %cst_49 = arith.constant dense<0.000000e+00> : vector<16x3xf32>
    %56 = tpu.matmul %19, %55, %cst_49 {dimension_numbers = #tpu.dot_dimension_numbers<[1], [0], [0], [1], [0, 0, 1, 1], [], []>} : vector<16x128xbf16>, vector<128x3xbf16>, vector<16x3xf32> -> vector<16x3xf32>
    %c0_50 = arith.constant 0 : index
    %c0_51 = arith.constant 0 : index
    %57 = vector.load %arg17[%c0_50, %c0_51] : memref<1x3xf32, #tpu.memory_space<vmem>>, vector<1x3xf32>
    %58 = vector.broadcast %57 : vector<1x3xf32> to vector<16x3xf32>
    %59 = arith.addf %56, %58 : vector<16x3xf32>
    %60 = arith.truncf %59 : vector<16x3xf32> to vector<16x3xbf16>
    %c0_52 = arith.constant 0 : index
    %c0_53 = arith.constant 0 : index
    %61 = vector.load %arg23[%c0_52, %c0_53] : memref<16x3xbf16, #tpu.memory_space<vmem>>, vector<16x3xbf16>
    tpu.vector_store %arg23[%c0_52, %c0_53], %60 {strides = array<i32>} : memref<16x3xbf16, #tpu.memory_space<vmem>>, vector<16x3xbf16>,
    return
  }
  func.func @transform_0(%arg0: i32) -> (i32, i32) {
    %c0_i32 = arith.constant 0 : i32
    %c0_i32_0 = arith.constant 0 : i32
    return %arg0, %c0_i32 : i32, i32
  }
  func.func @transform_1(%arg0: i32) -> (i32, i32) {
    %c0_i32 = arith.constant 0 : i32
    %c0_i32_0 = arith.constant 0 : i32
    %c0_i32_1 = arith.constant 0 : i32
    return %c0_i32, %c0_i32_0 : i32, i32
  }
  func.func @transform_2(%arg0: i32) -> (i32, i32) {
    %c0_i32 = arith.constant 0 : i32
    %c0_i32_0 = arith.constant 0 : i32
    %c0_i32_1 = arith.constant 0 : i32
    return %c0_i32, %c0_i32_0 : i32, i32
  }
  func.func @transform_3(%arg0: i32) -> (i32, i32) {
    %c0_i32 = arith.constant 0 : i32
    %c0_i32_0 = arith.constant 0 : i32
    %c0_i32_1 = arith.constant 0 : i32
    return %c0_i32, %c0_i32_0 : i32, i32
  }
  func.func @transform_4(%arg0: i32) -> (i32, i32) {
    %c0_i32 = arith.constant 0 : i32
    %c0_i32_0 = arith.constant 0 : i32
    %c0_i32_1 = arith.constant 0 : i32
    return %c0_i32, %c0_i32_0 : i32, i32
  }
  func.func @transform_5(%arg0: i32) -> (i32, i32) {
    %c0_i32 = arith.constant 0 : i32
    %c0_i32_0 = arith.constant 0 : i32
    %c0_i32_1 = arith.constant 0 : i32
    return %c0_i32, %c0_i32_0 : i32, i32
  }
  func.func @transform_6(%arg0: i32) -> (i32, i32) {
    %c0_i32 = arith.constant 0 : i32
    %c0_i32_0 = arith.constant 0 : i32
    %c0_i32_1 = arith.constant 0 : i32
    return %c0_i32, %c0_i32_0 : i32, i32
  }
  func.func @transform_7(%arg0: i32) -> (i32, i32) {
    %c0_i32 = arith.constant 0 : i32
    %c0_i32_0 = arith.constant 0 : i32
    %c0_i32_1 = arith.constant 0 : i32
    return %c0_i32, %c0_i32_0 : i32, i32
  }
  func.func @transform_8(%arg0: i32) -> (i32, i32) {
    %c0_i32 = arith.constant 0 : i32
    %c0_i32_0 = arith.constant 0 : i32
    %c0_i32_1 = arith.constant 0 : i32
    return %c0_i32, %c0_i32_0 : i32, i32
  }
  func.func @transform_9(%arg0: i32) -> (i32, i32) {
    %c0_i32 = arith.constant 0 : i32
    %c0_i32_0 = arith.constant 0 : i32
    %c0_i32_1 = arith.constant 0 : i32
    return %c0_i32, %c0_i32_0 : i32, i32
  }
  func.func @transform_10(%arg0: i32) -> (i32, i32) {
    %c0_i32 = arith.constant 0 : i32
    %c0_i32_0 = arith.constant 0 : i32
    %c0_i32_1 = arith.constant 0 : i32
    return %c0_i32, %c0_i32_0 : i32, i32
  }
  func.func @transform_11(%arg0: i32) -> (i32, i32) {
    %c0_i32 = arith.constant 0 : i32
    %c0_i32_0 = arith.constant 0 : i32
    %c0_i32_1 = arith.constant 0 : i32
    return %c0_i32, %c0_i32_0 : i32, i32
  }
  func.func @transform_12(%arg0: i32) -> (i32, i32) {
    %c0_i32 = arith.constant 0 : i32
    %c0_i32_0 = arith.constant 0 : i32
    %c0_i32_1 = arith.constant 0 : i32
    return %c0_i32, %c0_i32_0 : i32, i32
  }
  func.func @transform_13(%arg0: i32) -> (i32, i32) {
    %c0_i32 = arith.constant 0 : i32
    %c0_i32_0 = arith.constant 0 : i32
    %c0_i32_1 = arith.constant 0 : i32
    return %c0_i32, %c0_i32_0 : i32, i32
  }
  func.func @transform_14(%arg0: i32) -> (i32, i32) {
    %c0_i32 = arith.constant 0 : i32
    %c0_i32_0 = arith.constant 0 : i32
    %c0_i32_1 = arith.constant 0 : i32
    return %c0_i32, %c0_i32_0 : i32, i32
  }
  func.func @transform_15(%arg0: i32) -> (i32, i32) {
    %c0_i32 = arith.constant 0 : i32
    %c0_i32_0 = arith.constant 0 : i32
    %c0_i32_1 = arith.constant 0 : i32
    return %c0_i32, %c0_i32_0 : i32, i32
  }
  func.func @transform_16(%arg0: i32) -> (i32, i32) {
    %c0_i32 = arith.constant 0 : i32
    %c0_i32_0 = arith.constant 0 : i32
    %c0_i32_1 = arith.constant 0 : i32
    return %c0_i32, %c0_i32_0 : i32, i32
  }
  func.func @transform_17(%arg0: i32) -> (i32, i32) {
    %c0_i32 = arith.constant 0 : i32
    %c0_i32_0 = arith.constant 0 : i32
    return %arg0, %c0_i32 : i32, i32
  }
  func.func @transform_18(%arg0: i32) -> (i32, i32) {
    %c0_i32 = arith.constant 0 : i32
    %c0_i32_0 = arith.constant 0 : i32
    return %arg0, %c0_i32 : i32, i32
  }
  func.func @transform_19(%arg0: i32) -> (i32, i32) {
    %c0_i32 = arith.constant 0 : i32
    %c0_i32_0 = arith.constant 0 : i32
    return %arg0, %c0_i32 : i32, i32
  }
  func.func @transform_20(%arg0: i32) -> (i32, i32) {
    %c0_i32 = arith.constant 0 : i32
    %c0_i32_0 = arith.constant 0 : i32
    return %arg0, %c0_i32 : i32, i32
  }
  func.func @transform_21(%arg0: i32) -> (i32, i32) {
    %c0_i32 = arith.constant 0 : i32
    %c0_i32_0 = arith.constant 0 : i32
    return %arg0, %c0_i32 : i32, i32
  }
  func.func @transform_22(%arg0: i32) -> (i32, i32) {
    %c0_i32 = arith.constant 0 : i32
    %c0_i32_0 = arith.constant 0 : i32
    return %arg0, %c0_i32 : i32, i32
  }
}

</mosaic_0001>

<llo_original>
// kernel: tpu_custom_call.1
$region0: #{tpu_custom_call.1}
  #allocation0 [shape = 'u32[]', space=smem, size = 0x4, offset = 0x4, fixed_abs, tag = 'smem constant byte address 0x4 - core index']
  #allocation1 [shape = 'u32[144,128]{1,0:T(1,128)}', space=vmem, size = 0x12000, scoped, tag = 'internal scratch']
  %s0 = inlined_call_operand.vmem [shape: f32[16,32], index: 0, kind: input, shape index: {}]
  %s1 = inlined_call_operand.vmem [shape: bf16[32,128], index: 1, kind: input, shape index: {}]
  %s2 = inlined_call_operand.vmem [shape: f32[1,128], index: 2, kind: input, shape index: {}]
  %s3 = inlined_call_operand.vmem [shape: bf16[128,128], index: 3, kind: input, shape index: {}]
  %s4 = inlined_call_operand.vmem [shape: f32[1,128], index: 4, kind: input, shape index: {}]
  %s5 = inlined_call_operand.vmem [shape: bf16[128,64], index: 5, kind: input, shape index: {}]
  %s6 = inlined_call_operand.vmem [shape: bf16[128,32], index: 6, kind: input, shape index: {}]
  %s7 = inlined_call_operand.hbm [shape: bf16[128,1024], index: 7, kind: input, shape index: {}]
  %s8 = inlined_call_operand.vmem [shape: bf16[128,32], index: 8, kind: input, shape index: {}]
  %s9 = inlined_call_operand.vmem [shape: bf16[128,96], index: 9, kind: input, shape index: {}]
  %s10 = inlined_call_operand.vmem [shape: bf16[128,3], index: 10, kind: input, shape index: {}]
  %s11 = inlined_call_operand.vmem [shape: f32[1,64], index: 11, kind: input, shape index: {}]
  %s12 = inlined_call_operand.vmem [shape: f32[1,32], index: 12, kind: input, shape index: {}]
  %s13 = inlined_call_operand.vmem [shape: f32[1,1024], index: 13, kind: input, shape index: {}]
  %s14 = inlined_call_operand.vmem [shape: f32[1,32], index: 14, kind: input, shape index: {}]
  %s15 = inlined_call_operand.vmem [shape: f32[1,96], index: 15, kind: input, shape index: {}]
  %s16 = inlined_call_operand.vmem [shape: f32[1,3], index: 16, kind: input, shape index: {}]
  %s17 = inlined_call_operand.hbm [shape: bf16[16,64], index: 17, kind: output, shape index: {0}]
  %s18 = inlined_call_operand.hbm [shape: bf16[16,32], index: 18, kind: output, shape index: {1}]
  %s19 = inlined_call_operand.hbm [shape: bf16[16,1024], index: 19, kind: output, shape index: {2}]
  %s20 = inlined_call_operand.hbm [shape: bf16[16,32], index: 20, kind: output, shape index: {3}]
  %s21 = inlined_call_operand.hbm [shape: bf16[16,96], index: 21, kind: output, shape index: {4}]
  %s22 = inlined_call_operand.vmem [shape: bf16[16,3], index: 22, kind: output, shape index: {5}]
  %23 = xla_tuple %s17, %s18, %s19, %s20, %s21, %s22
  %s24 = sld [smem:[#allocation0]]
  $region122: #{tpu_custom_call.1} parent=0
    _
  %s26 = ssub.s32 1, %s24
  %s27 = scalar_select 0, %s26, %s24
  $region1: #{tpu_custom_call.1} parent=0
    #allocation2 [shape = 'u8[262144]{0}', space=vmem, size = 0x40000, scoped, tag = 'input window, operand 7, single buffered']
    #allocation3 [shape = 's32[1]{0}', space=sflag, size = 0x4, scoped, tag = 'scoped memory for tpu_custom_call.1']
    #allocation4 [shape = 's32[1]{0}', space=sflag, size = 0x4, scoped, tag = 'scoped memory for tpu_custom_call.1']
    #allocation5 [shape = 'u8[4096]{0}', space=vmem, size = 0x1000, scoped, tag = 'output window, operand 0, single buffered']
    #allocation6 [shape = 'u8[4096]{0}', space=vmem, size = 0x1000, scoped, tag = 'output window, operand 1, single buffered']
    #allocation7 [shape = 's32[1]{0}', space=sflag, size = 0x4, scoped, tag = 'scoped memory for tpu_custom_call.1']
    #allocation8 [shape = 'u8[32768]{0}', space=vmem, size = 0x8000, scoped, tag = 'output window, operand 2, single buffered']
    #allocation9 [shape = 'u8[4096]{0}', space=vmem, size = 0x1000, scoped, tag = 'output window, operand 3, single buffered']
    #allocation10 [shape = 's32[1]{0}', space=sflag, size = 0x4, scoped, tag = 'scoped memory for tpu_custom_call.1']
    #allocation11 [shape = 'u8[4096]{0}', space=vmem, size = 0x1000, scoped, tag = 'output window, operand 4, single buffered']
    %28 = vsyncpa [#allocation3], 0
    %29 = vsyncpa [#allocation4], 0
    %30 = vsyncpa [#allocation7], 0
    %31 = vsyncpa [#allocation10], 0
    // Predicated region
    $region2: #{tpu_custom_call.1} parent=1 // pred_check
      _
    $region3: #{tpu_custom_call.1} parent=1 // pred_check_branch
      %33 = sbr.rel (0) target = $region5
    $region4: #{tpu_custom_call.1} parent=1 // pred_region
      _
    $region5: #{tpu_custom_call.1} parent=1 // pred_fallthru
      _
    // Predicated region
    $region6: #{tpu_custom_call.1} parent=1 // pred_check
      _
    $region7: #{tpu_custom_call.1} parent=1 // pred_check_branch
      %35 = sbr.rel (0) target = $region9
    $region8: #{tpu_custom_call.1} parent=1 // pred_region
      _
    $region9: #{tpu_custom_call.1} parent=1 // pred_fallthru
      _
    // Predicated region
    $region10: #{tpu_custom_call.1} parent=1 // pred_check
      _
    $region11: #{tpu_custom_call.1} parent=1 // pred_check_branch
      %37 = sbr.rel (0) target = $region13
    $region12: #{tpu_custom_call.1} parent=1 // pred_region
      _
    $region13: #{tpu_custom_call.1} parent=1 // pred_fallthru
      _
    // Predicated region
    $region14: #{tpu_custom_call.1} parent=1 // pred_check
      _
    $region15: #{tpu_custom_call.1} parent=1 // pred_check_branch
      %39 = sbr.rel (0) target = $region17
    $region16: #{tpu_custom_call.1} parent=1 // pred_region
      _
    $region17: #{tpu_custom_call.1} parent=1 // pred_fallthru
      _
    // Predicated region
    $region18: #{tpu_custom_call.1} parent=1 // pred_check
      _
    $region19: #{tpu_custom_call.1} parent=1 // pred_check_branch
      %41 = sbr.rel (0) target = $region21
    $region20: #{tpu_custom_call.1} parent=1 // pred_region
      _
    $region21: #{tpu_custom_call.1} parent=1 // pred_fallthru
      _
    // Predicated region
    $region22: #{tpu_custom_call.1} parent=1 // pred_check
      _
    $region23: #{tpu_custom_call.1} parent=1 // pred_check_branch
      %43 = sbr.rel (0) target = $region25
    $region24: #{tpu_custom_call.1} parent=1 // pred_region
      _
    $region25: #{tpu_custom_call.1} parent=1 // pred_fallthru
      _
    // Predicated region
    $region26: #{tpu_custom_call.1} parent=1 // pred_check
      _
    $region27: #{tpu_custom_call.1} parent=1 // pred_check_branch
      %45 = sbr.rel (0) target = $region29
    $region28: #{tpu_custom_call.1} parent=1 // pred_region
      _
    $region29: #{tpu_custom_call.1} parent=1 // pred_fallthru
      _
    // Predicated region
    $region30: #{tpu_custom_call.1} parent=1 // pred_check
      _
    $region31: #{tpu_custom_call.1} parent=1 // pred_check_branch
      %47 = sbr.rel (0) target = $region33
    $region32: #{tpu_custom_call.1} parent=1 // pred_region
      %s49 = ssub.s32 8192, 8192
      %50 = vsyncadd [#allocation3], %s49
      %s51 = sshll.u32 [#allocation2], 4
      %s52 = int_to_ptr.vmem [resolvable:$true] %s51
      %57 = dma.hbm_to_vmem [thread:$0]  %s7, 8192, %s52, [#allocation3], 512, 512, 32
    $region33: #{tpu_custom_call.1} parent=1 // pred_fallthru
      _
    // Predicated region
    $region34: #{tpu_custom_call.1} parent=1 // pred_check
      _
    $region35: #{tpu_custom_call.1} parent=1 // pred_check_branch
      %59 = sbr.rel (0) target = $region37
    $region36: #{tpu_custom_call.1} parent=1 // pred_region
      _
    $region37: #{tpu_custom_call.1} parent=1 // pred_fallthru
      _
    // Predicated region
    $region38: #{tpu_custom_call.1} parent=1 // pred_check
      _
    $region39: #{tpu_custom_call.1} parent=1 // pred_check_branch
      %61 = sbr.rel (0) target = $region41
    $region40: #{tpu_custom_call.1} parent=1 // pred_region
      _
    $region41: #{tpu_custom_call.1} parent=1 // pred_fallthru
      _
    // Predicated region
    $region42: #{tpu_custom_call.1} parent=1 // pred_check
      _
    $region43: #{tpu_custom_call.1} parent=1 // pred_check_branch
      %63 = sbr.rel (0) target = $region45
    $region44: #{tpu_custom_call.1} parent=1 // pred_region
      _
    $region45: #{tpu_custom_call.1} parent=1 // pred_fallthru
      _
    // Predicated region
    $region46: #{tpu_custom_call.1} parent=1 // pred_check
      _
    $region47: #{tpu_custom_call.1} parent=1 // pred_check_branch
      %65 = sbr.rel (0) target = $region49
    $region48: #{tpu_custom_call.1} parent=1 // pred_region
      _
    $region49: #{tpu_custom_call.1} parent=1 // pred_fallthru
      _
    // Predicated region
    $region50: #{tpu_custom_call.1} parent=1 // pred_check
      _
    $region51: #{tpu_custom_call.1} parent=1 // pred_check_branch
      %67 = sbr.rel (0) target = $region53
    $region52: #{tpu_custom_call.1} parent=1 // pred_region
      _
    $region53: #{tpu_custom_call.1} parent=1 // pred_fallthru
      _
    // Predicated region
    $region54: #{tpu_custom_call.1} parent=1 // pred_check
      _
    $region55: #{tpu_custom_call.1} parent=1 // pred_check_branch
      %69 = sbr.rel (0) target = $region57
    $region56: #{tpu_custom_call.1} parent=1 // pred_region
      _
    $region57: #{tpu_custom_call.1} parent=1 // pred_fallthru
      _
    // Predicated region
    $region58: #{tpu_custom_call.1} parent=1 // pred_check
      _
    $region59: #{tpu_custom_call.1} parent=1 // pred_check_branch
      %71 = sbr.rel (0) target = $region61
    $region60: #{tpu_custom_call.1} parent=1 // pred_region
      _
    $region61: #{tpu_custom_call.1} parent=1 // pred_fallthru
      _
    // Predicated region
    $region62: #{tpu_custom_call.1} parent=1 // pred_check
      _
    $region63: #{tpu_custom_call.1} parent=1 // pred_check_branch
      %73 = sbr.rel (0) target = $region65
    $region64: #{tpu_custom_call.1} parent=1 // pred_region
      _
    $region65: #{tpu_custom_call.1} parent=1 // pred_fallthru
      _
    // Predicated region
    $region66: #{tpu_custom_call.1} parent=1 // pred_check
      _
    $region67: #{tpu_custom_call.1} parent=1 // pred_check_branch
      %75 = sbr.rel (0) target = $region69
    $region68: #{tpu_custom_call.1} parent=1 // pred_region
      _
    $region69: #{tpu_custom_call.1} parent=1 // pred_fallthru
      _
    // Predicated region
    $region70: #{tpu_custom_call.1} parent=1 // pred_check
      _
    $region71: #{tpu_custom_call.1} parent=1 // pred_check_branch
      %77 = sbr.rel (0) target = $region73
    $region72: #{tpu_custom_call.1} parent=1 // pred_region
      %78 = dma.done [#allocation3], 8192
    $region73: #{tpu_custom_call.1} parent=1 // pred_fallthru
      _
    %v80 = vld [vmem:[%s0] sm:$0xff]
    %v81 = vld [vmem:[%s0 + $0x8] sm:$0xff]
    %v82 = vpack.c.bf16 %v81, %v80
    %v83 = vld [vmem:[%s1] sm:$0xf]
    %v84 = vld [vmem:[%s1 + $0x4] sm:$0xf]
    %v85 = vld [vmem:[%s1 + $0x8] sm:$0xf]
    %v86 = vld [vmem:[%s1 + $0xc] sm:$0xf]
    %v87 = vld [vmem:[%s2] sm:$0x1]
    %v89 = vlaneseq
    %v90 = vshrl.u32 %v89, 7
    %v91 = vsub.s32 0, %v90
    %v92 = vrot.slane %v87, %v91
    %v98 = vunpack.c.l.b16 %v83
    %v99 = vunpack.c.l.b16 %v84
    %v100 = vunpack.c.l.b16 %v85
    %v101 = vunpack.c.l.b16 %v86
    %v102 = vpack.c.b16 %v99, %v98
    %v103 = vpack.c.b16 %v101, %v100
    %vm106 = vcmask 261120
    %v108 = vsel %vm106, %v82, 0
    %110 = vmatprep.subr.bf16.mxu0 0
    %111 = vmatpush1.bf16.msra.mxu0 %v102
    %112 = vmatprep.subr.bf16.mxu0 0
    %113 = vmatpush1.bf16.msra.mxu0 %v103
    %114 = vmatprep.subr.bf16.mxu0 0
    %115 = vmatpush1.bf16.msra.mxu0 0
    %116 = vmatprep.subr.bf16.mxu0 0
    %117 = vmatpush1.bf16.msra.mxu0 0
    %118 = vmatprep.subr.bf16.mxu0 0
    %119 = vmatpush1.bf16.msra.mxu0 0
    %120 = vmatprep.subr.bf16.mxu0 0
    %121 = vmatpush1.bf16.msra.mxu0 0
    %122 = vmatprep.subr.bf16.mxu0 0
    %123 = vmatpush1.bf16.msra.mxu0 0
    %124 = vmatprep.subr.bf16.mxu0 0
    %125 = vmatpush1.bf16.msra.mxu0 0
    %126 = vmatprep.subr.bf16.mxu0 0
    %127 = vmatpush1.bf16.msra.mxu0 0
    %128 = vmatprep.subr.bf16.mxu0 0
    %129 = vmatpush1.bf16.msra.mxu0 0
    %130 = vmatprep.subr.bf16.mxu0 0
    %131 = vmatpush1.bf16.msra.mxu0 0
    %132 = vmatprep.subr.bf16.mxu0 0
    %133 = vmatpush1.bf16.msra.mxu0 0
    %134 = vmatprep.subr.bf16.mxu0 0
    %135 = vmatpush1.bf16.msra.mxu0 0
    %136 = vmatprep.subr.bf16.mxu0 0
    %137 = vmatpush1.bf16.msra.mxu0 0
    %138 = vmatprep.subr.bf16.mxu0 0
    %139 = vmatpush1.bf16.msra.mxu0 0
    %140 = vmatprep.subr.bf16.mxu0 0
    %141 = vmatpush1.bf16.msra.mxu0 0
    %142 = vmatprep.mubr.bf16.mxu0 0
    %143 = vmatmul.mubr.bf16.gmra.mrb[0].mxu0 %v108
    %v144 = vpop.f32.mrb[0].mxu0
    %v145 = vadd.f32 %v92, %v144
    %v146 = vpop.f32.mrb[0].mxu0
    %v147 = vpop.f32.mrb[0].mxu0
    %v148 = vadd.f32 %v92, %v147
    %v149 = vpop.f32.mrb[0].mxu0
    %150 = vdwg.mxu0
    %v151 = vmul.f32 %v145, 0.1
    %v152 = vmul.f32 %v148, 0.1
    %v153 = vmax.f32 %v145, %v151
    %v154 = vmax.f32 %v148, %v152
    %v155 = vpack.c.bf16 %v154, %v153
    %v156 = vld [vmem:[%s3] sm:$0xf]
    %v157 = vld [vmem:[%s3 + $0x4] sm:$0xf]
    %v158 = vld [vmem:[%s3 + $0x8] sm:$0xf]
    %v159 = vld [vmem:[%s3 + $0xc] sm:$0xf]
    %v160 = vld [vmem:[%s3 + $0x10] sm:$0xf]
    %v161 = vld [vmem:[%s3 + $0x14] sm:$0xf]
    %v162 = vld [vmem:[%s3 + $0x18] sm:$0xf]
    %v163 = vld [vmem:[%s3 + $0x1c] sm:$0xf]
    %v164 = vld [vmem:[%s3 + $0x20] sm:$0xf]
    %v165 = vld [vmem:[%s3 + $0x24] sm:$0xf]
    %v166 = vld [vmem:[%s3 + $0x28] sm:$0xf]
    %v167 = vld [vmem:[%s3 + $0x2c] sm:$0xf]
    %v168 = vld [vmem:[%s3 + $0x30] sm:$0xf]
    %v169 = vld [vmem:[%s3 + $0x34] sm:$0xf]
    %v170 = vld [vmem:[%s3 + $0x38] sm:$0xf]
    %v171 = vld [vmem:[%s3 + $0x3c] sm:$0xf]
    %v172 = vld [vmem:[%s4] sm:$0x1]
    %v174 = vlaneseq
    %v175 = vshrl.u32 %v174, 7
    %v176 = vsub.s32 0, %v175
    %v177 = vrot.slane %v172, %v176
    %v195 = vunpack.c.l.b16 %v156
    %v196 = vunpack.c.l.b16 %v157
    %v197 = vunpack.c.l.b16 %v158
    %v198 = vunpack.c.l.b16 %v159
    %v199 = vunpack.c.l.b16 %v160
    %v200 = vunpack.c.l.b16 %v161
    %v201 = vunpack.c.l.b16 %v162
    %v202 = vunpack.c.l.b16 %v163
    %v203 = vunpack.c.l.b16 %v164
    %v204 = vunpack.c.l.b16 %v165
    %v205 = vunpack.c.l.b16 %v166
    %v206 = vunpack.c.l.b16 %v167
    %v207 = vunpack.c.l.b16 %v168
    %v208 = vunpack.c.l.b16 %v169
    %v209 = vunpack.c.l.b16 %v170
    %v210 = vunpack.c.l.b16 %v171
    %v211 = vpack.c.b16 %v196, %v195
    %v212 = vpack.c.b16 %v198, %v197
    %v213 = vpack.c.b16 %v200, %v199
    %v214 = vpack.c.b16 %v202, %v201
    %v215 = vpack.c.b16 %v204, %v203
    %v216 = vpack.c.b16 %v206, %v205
    %v217 = vpack.c.b16 %v208, %v207
    %v218 = vpack.c.b16 %v210, %v209
    %227 = vmatprep.subr.bf16.mxu0 0
    %228 = vmatpush1.bf16.msra.mxu0 %v211
    %229 = vmatprep.subr.bf16.mxu0 0
    %230 = vmatpush1.bf16.msra.mxu0 %v212
    %231 = vmatprep.subr.bf16.mxu0 0
    %232 = vmatpush1.bf16.msra.mxu0 %v213
    %233 = vmatprep.subr.bf16.mxu0 0
    %234 = vmatpush1.bf16.msra.mxu0 %v214
    %235 = vmatprep.subr.bf16.mxu0 0
    %236 = vmatpush1.bf16.msra.mxu0 %v215
    %237 = vmatprep.subr.bf16.mxu0 0
    %238 = vmatpush1.bf16.msra.mxu0 %v216
    %239 = vmatprep.subr.bf16.mxu0 0
    %240 = vmatpush1.bf16.msra.mxu0 %v217
    %241 = vmatprep.subr.bf16.mxu0 0
    %242 = vmatpush1.bf16.msra.mxu0 %v218
    %243 = vmatprep.subr.bf16.mxu0 0
    %244 = vmatpush1.bf16.msra.mxu0 0
    %245 = vmatprep.subr.bf16.mxu0 0
    %246 = vmatpush1.bf16.msra.mxu0 0
    %247 = vmatprep.subr.bf16.mxu0 0
    %248 = vmatpush1.bf16.msra.mxu0 0
    %249 = vmatprep.subr.bf16.mxu0 0
    %250 = vmatpush1.bf16.msra.mxu0 0
    %251 = vmatprep.subr.bf16.mxu0 0
    %252 = vmatpush1.bf16.msra.mxu0 0
    %253 = vmatprep.subr.bf16.mxu0 0
    %254 = vmatpush1.bf16.msra.mxu0 0
    %255 = vmatprep.subr.bf16.mxu0 0
    %256 = vmatpush1.bf16.msra.mxu0 0
    %257 = vmatprep.subr.bf16.mxu0 0
    %258 = vmatpush1.bf16.msra.mxu0 0
    %259 = vmatprep.mubr.bf16.mxu0 0
    %260 = vmatmul.mubr.bf16.gmra.mrb[0].mxu0 %v155
    %v261 = vpop.f32.mrb[0].mxu0
    %v262 = vadd.f32 %v177, %v261
    %v263 = vpop.f32.mrb[0].mxu0
    %v264 = vpop.f32.mrb[0].mxu0
    %v265 = vadd.f32 %v177, %v264
    %v266 = vpop.f32.mrb[0].mxu0
    %267 = vdwg.mxu0
    %v268 = vmul.f32 %v262, 0.1
    %v269 = vmul.f32 %v265, 0.1
    %v270 = vmax.f32 %v262, %v268
    %v271 = vmax.f32 %v265, %v269
    %v272 = vpack.c.bf16 %v271, %v270
    %v273 = vld [vmem:[%s5] sm:$0xf]
    %v274 = vld [vmem:[%s5 + $0x4] sm:$0xf]
    %v275 = vld [vmem:[%s5 + $0x8] sm:$0xf]
    %v276 = vld [vmem:[%s5 + $0xc] sm:$0xf]
    %v277 = vld [vmem:[%s5 + $0x10] sm:$0xf]
    %v278 = vld [vmem:[%s5 + $0x14] sm:$0xf]
    %v279 = vld [vmem:[%s5 + $0x18] sm:$0xf]
    %v280 = vld [vmem:[%s5 + $0x1c] sm:$0xf]
    %v281 = vld [vmem:[%s5 + $0x20] sm:$0xf]
    %v282 = vld [vmem:[%s5 + $0x24] sm:$0xf]
    %v283 = vld [vmem:[%s5 + $0x28] sm:$0xf]
    %v284 = vld [vmem:[%s5 + $0x2c] sm:$0xf]
    %v285 = vld [vmem:[%s5 + $0x30] sm:$0xf]
    %v286 = vld [vmem:[%s5 + $0x34] sm:$0xf]
    %v287 = vld [vmem:[%s5 + $0x38] sm:$0xf]
    %v288 = vld [vmem:[%s5 + $0x3c] sm:$0xf]
    %v289 = vld [vmem:[%s11] sm:$0x1]
    %v291 = vlaneseq
    %v292 = vshrl.u32 %v291, 7
    %v293 = vsub.s32 0, %v292
    %v294 = vrot.slane %v289, %v293
    %v312 = vunpack.c.l.b16 %v273
    %v313 = vunpack.c.l.b16 %v274
    %v314 = vunpack.c.l.b16 %v275
    %v315 = vunpack.c.l.b16 %v276
    %v316 = vunpack.c.l.b16 %v277
    %v317 = vunpack.c.l.b16 %v278
    %v318 = vunpack.c.l.b16 %v279
    %v319 = vunpack.c.l.b16 %v280
    %v320 = vunpack.c.l.b16 %v281
    %v321 = vunpack.c.l.b16 %v282
    %v322 = vunpack.c.l.b16 %v283
    %v323 = vunpack.c.l.b16 %v284
    %v324 = vunpack.c.l.b16 %v285
    %v325 = vunpack.c.l.b16 %v286
    %v326 = vunpack.c.l.b16 %v287
    %v327 = vunpack.c.l.b16 %v288
    %v328 = vpack.c.b16 %v313, %v312
    %v329 = vpack.c.b16 %v315, %v314
    %v330 = vpack.c.b16 %v317, %v316
    %v331 = vpack.c.b16 %v319, %v318
    %v332 = vpack.c.b16 %v321, %v320
    %v333 = vpack.c.b16 %v323, %v322
    %v334 = vpack.c.b16 %v325, %v324
    %v335 = vpack.c.b16 %v327, %v326
    %344 = vmatprep.subr.bf16.mxu0 0
    %345 = vmatpush1.bf16.msra.mxu0 %v328
    %346 = vmatprep.subr.bf16.mxu0 0
    %347 = vmatpush1.bf16.msra.mxu0 %v329
    %348 = vmatprep.subr.bf16.mxu0 0
    %349 = vmatpush1.bf16.msra.mxu0 %v330
    %350 = vmatprep.subr.bf16.mxu0 0
    %351 = vmatpush1.bf16.msra.mxu0 %v331
    %352 = vmatprep.subr.bf16.mxu0 0
    %353 = vmatpush1.bf16.msra.mxu0 %v332
    %354 = vmatprep.subr.bf16.mxu0 0
    %355 = vmatpush1.bf16.msra.mxu0 %v333
    %356 = vmatprep.subr.bf16.mxu0 0
    %357 = vmatpush1.bf16.msra.mxu0 %v334
    %358 = vmatprep.subr.bf16.mxu0 0
    %359 = vmatpush1.bf16.msra.mxu0 %v335
    %360 = vmatprep.subr.bf16.mxu0 0
    %361 = vmatpush1.bf16.msra.mxu0 0
    %362 = vmatprep.subr.bf16.mxu0 0
    %363 = vmatpush1.bf16.msra.mxu0 0
    %364 = vmatprep.subr.bf16.mxu0 0
    %365 = vmatpush1.bf16.msra.mxu0 0
    %366 = vmatprep.subr.bf16.mxu0 0
    %367 = vmatpush1.bf16.msra.mxu0 0
    %368 = vmatprep.subr.bf16.mxu0 0
    %369 = vmatpush1.bf16.msra.mxu0 0
    %370 = vmatprep.subr.bf16.mxu0 0
    %371 = vmatpush1.bf16.msra.mxu0 0
    %372 = vmatprep.subr.bf16.mxu0 0
    %373 = vmatpush1.bf16.msra.mxu0 0
    %374 = vmatprep.subr.bf16.mxu0 0
    %375 = vmatpush1.bf16.msra.mxu0 0
    %376 = vmatprep.mubr.bf16.mxu0 0
    %377 = vmatmul.mubr.bf16.gmra.mrb[0].mxu0 %v272
    %v378 = vpop.f32.mrb[0].mxu0
    %v379 = vadd.f32 %v294, %v378
    %v380 = vpop.f32.mrb[0].mxu0
    %v381 = vpop.f32.mrb[0].mxu0
    %v382 = vadd.f32 %v294, %v381
    %v383 = vpop.f32.mrb[0].mxu0
    %384 = vdwg.mxu0
    %v385 = vpack.c.bf16 %v382, %v379
    %v387 = vunpack.c.l.b16 %v385
    %v388 = vunpack.c.h.b16 %v385
    %v389 = vpack.c.b16 %v387, %v387
    %v390 = vpack.c.b16 %v388, %v388
    %vm393 = vcmask 519168
    %394 = vst.msk [vmem:[#allocation5] sm:$0xf] %vm393, %v389
    %395 = vst.msk [vmem:[#allocation5 + $0x4] sm:$0xf] %vm393, %v390
    %v396 = vld [vmem:[%s6] sm:$0xf]
    %v397 = vld [vmem:[%s6 + $0x4] sm:$0xf]
    %v398 = vld [vmem:[%s6 + $0x8] sm:$0xf]
    %v399 = vld [vmem:[%s6 + $0xc] sm:$0xf]
    %v400 = vld [vmem:[%s6 + $0x10] sm:$0xf]
    %v401 = vld [vmem:[%s6 + $0x14] sm:$0xf]
    %v402 = vld [vmem:[%s6 + $0x18] sm:$0xf]
    %v403 = vld [vmem:[%s6 + $0x1c] sm:$0xf]
    %v404 = vld [vmem:[%s6 + $0x20] sm:$0xf]
    %v405 = vld [vmem:[%s6 + $0x24] sm:$0xf]
    %v406 = vld [vmem:[%s6 + $0x28] sm:$0xf]
    %v407 = vld [vmem:[%s6 + $0x2c] sm:$0xf]
    %v408 = vld [vmem:[%s6 + $0x30] sm:$0xf]
    %v409 = vld [vmem:[%s6 + $0x34] sm:$0xf]
    %v410 = vld [vmem:[%s6 + $0x38] sm:$0xf]
    %v411 = vld [vmem:[%s6 + $0x3c] sm:$0xf]
    %v412 = vld [vmem:[%s12] sm:$0x1]
    %v414 = vlaneseq
    %v415 = vshrl.u32 %v414, 7
    %v416 = vsub.s32 0, %v415
    %v417 = vrot.slane %v412, %v416
    %v435 = vunpack.c.l.b16 %v396
    %v436 = vunpack.c.l.b16 %v397
    %v437 = vunpack.c.l.b16 %v398
    %v438 = vunpack.c.l.b16 %v399
    %v439 = vunpack.c.l.b16 %v400
    %v440 = vunpack.c.l.b16 %v401
    %v441 = vunpack.c.l.b16 %v402
    %v442 = vunpack.c.l.b16 %v403
    %v443 = vunpack.c.l.b16 %v404
    %v444 = vunpack.c.l.b16 %v405
    %v445 = vunpack.c.l.b16 %v406
    %v446 = vunpack.c.l.b16 %v407
    %v447 = vunpack.c.l.b16 %v408
    %v448 = vunpack.c.l.b16 %v409
    %v449 = vunpack.c.l.b16 %v410
    %v450 = vunpack.c.l.b16 %v411
    %v451 = vpack.c.b16 %v436, %v435
    %v452 = vpack.c.b16 %v438, %v437
    %v453 = vpack.c.b16 %v440, %v439
    %v454 = vpack.c.b16 %v442, %v441
    %v455 = vpack.c.b16 %v444, %v443
    %v456 = vpack.c.b16 %v446, %v445
    %v457 = vpack.c.b16 %v448, %v447
    %v458 = vpack.c.b16 %v450, %v449
    %467 = vmatprep.subr.bf16.mxu0 0
    %468 = vmatpush1.bf16.msra.mxu0 %v451
    %469 = vmatprep.subr.bf16.mxu0 0
    %470 = vmatpush1.bf16.msra.mxu0 %v452
    %471 = vmatprep.subr.bf16.mxu0 0
    %472 = vmatpush1.bf16.msra.mxu0 %v453
    %473 = vmatprep.subr.bf16.mxu0 0
    %474 = vmatpush1.bf16.msra.mxu0 %v454
    %475 = vmatprep.subr.bf16.mxu0 0
    %476 = vmatpush1.bf16.msra.mxu0 %v455
    %477 = vmatprep.subr.bf16.mxu0 0
    %478 = vmatpush1.bf16.msra.mxu0 %v456
    %479 = vmatprep.subr.bf16.mxu0 0
    %480 = vmatpush1.bf16.msra.mxu0 %v457
    %481 = vmatprep.subr.bf16.mxu0 0
    %482 = vmatpush1.bf16.msra.mxu0 %v458
    %483 = vmatprep.subr.bf16.mxu0 0
    %484 = vmatpush1.bf16.msra.mxu0 0
    %485 = vmatprep.subr.bf16.mxu0 0
    %486 = vmatpush1.bf16.msra.mxu0 0
    %487 = vmatprep.subr.bf16.mxu0 0
    %488 = vmatpush1.bf16.msra.mxu0 0
    %489 = vmatprep.subr.bf16.mxu0 0
    %490 = vmatpush1.bf16.msra.mxu0 0
    %491 = vmatprep.subr.bf16.mxu0 0
    %492 = vmatpush1.bf16.msra.mxu0 0
    %493 = vmatprep.subr.bf16.mxu0 0
    %494 = vmatpush1.bf16.msra.mxu0 0
    %495 = vmatprep.subr.bf16.mxu0 0
    %496 = vmatpush1.bf16.msra.mxu0 0
    %497 = vmatprep.subr.bf16.mxu0 0
    %498 = vmatpush1.bf16.msra.mxu0 0
    %499 = vmatprep.mubr.bf16.mxu0 0
    %500 = vmatmul.mubr.bf16.gmra.mrb[0].mxu0 %v272
    %v501 = vpop.f32.mrb[0].mxu0
    %v502 = vadd.f32 %v417, %v501
    %v503 = vpop.f32.mrb[0].mxu0
    %v504 = vpop.f32.mrb[0].mxu0
    %v505 = vadd.f32 %v417, %v504
    %v506 = vpop.f32.mrb[0].mxu0
    %507 = vdwg.mxu0
    %v508 = vpack.c.bf16 %v505, %v502
    %v510 = vunpack.c.l.b16 %v508
    %v511 = vunpack.c.h.b16 %v508
    %v512 = vpack.c.b16 %v510, %v510
    %v513 = vpack.c.b16 %v511, %v511
    %vm516 = vcmask 257024
    %517 = vst.msk [vmem:[#allocation6] sm:$0xf] %vm516, %v512
    %518 = vst.msk [vmem:[#allocation6 + $0x4] sm:$0xf] %vm516, %v513
    %v519 = vld [vmem:[#allocation2] sm:$0xff]
    %v520 = vld [vmem:[#allocation2 + $0x8] sm:$0xff]
    %v521 = vld [vmem:[#allocation2 + $0x10] sm:$0xff]
    %v522 = vld [vmem:[#allocation2 + $0x18] sm:$0xff]
    %v523 = vld [vmem:[#allocation2 + $0x20] sm:$0xff]
    %v524 = vld [vmem:[#allocation2 + $0x28] sm:$0xff]
    %v525 = vld [vmem:[#allocation2 + $0x30] sm:$0xff]
    %v526 = vld [vmem:[#allocation2 + $0x38] sm:$0xff]
    %v527 = vld [vmem:[#allocation2 + $0x40] sm:$0xff]
    %v528 = vld [vmem:[#allocation2 + $0x48] sm:$0xff]
    %v529 = vld [vmem:[#allocation2 + $0x50] sm:$0xff]
    %v530 = vld [vmem:[#allocation2 + $0x58] sm:$0xff]
    %v531 = vld [vmem:[#allocation2 + $0x60] sm:$0xff]
    %v532 = vld [vmem:[#allocation2 + $0x68] sm:$0xff]
    %v533 = vld [vmem:[#allocation2 + $0x70] sm:$0xff]
    %v534 = vld [vmem:[#allocation2 + $0x78] sm:$0xff]
    %v535 = vld [vmem:[#allocation2 + $0x80] sm:$0xff]
    %v536 = vld [vmem:[#allocation2 + $0x88] sm:$0xff]
    %v537 = vld [vmem:[#allocation2 + $0x90] sm:$0xff]
    %v538 = vld [vmem:[#allocation2 + $0x98] sm:$0xff]
    %v539 = vld [vmem:[#allocation2 + $0xa0] sm:$0xff]
    %v540 = vld [vmem:[#allocation2 + $0xa8] sm:$0xff]
    %v541 = vld [vmem:[#allocation2 + $0xb0] sm:$0xff]
    %v542 = vld [vmem:[#allocation2 + $0xb8] sm:$0xff]
    %v543 = vld [vmem:[#allocation2 + $0xc0] sm:$0xff]
    %v544 = vld [vmem:[#allocation2 + $0xc8] sm:$0xff]
    %v545 = vld [vmem:[#allocation2 + $0xd0] sm:$0xff]
    %v546 = vld [vmem:[#allocation2 + $0xd8] sm:$0xff]
    %v547 = vld [vmem:[#allocation2 + $0xe0] sm:$0xff]
    %v548 = vld [vmem:[#allocation2 + $0xe8] sm:$0xff]
    %v549 = vld [vmem:[#allocation2 + $0xf0] sm:$0xff]
    %v550 = vld [vmem:[#allocation2 + $0xf8] sm:$0xff]
    %v551 = vld [vmem:[#allocation2 + $0x100] sm:$0xff]
    %v552 = vld [vmem:[#allocation2 + $0x108] sm:$0xff]
    %v553 = vld [vmem:[#allocation2 + $0x110] sm:$0xff]
    %v554 = vld [vmem:[#allocation2 + $0x118] sm:$0xff]
    %v555 = vld [vmem:[#allocation2 + $0x120] sm:$0xff]
    %v556 = vld [vmem:[#allocation2 + $0x128] sm:$0xff]
    %v557 = vld [vmem:[#allocation2 + $0x130] sm:$0xff]
    %v558 = vld [vmem:[#allocation2 + $0x138] sm:$0xff]
    %v559 = vld [vmem:[#allocation2 + $0x140] sm:$0xff]
    %v560 = vld [vmem:[#allocation2 + $0x148] sm:$0xff]
    %v561 = vld [vmem:[#allocation2 + $0x150] sm:$0xff]
    %v562 = vld [vmem:[#allocation2 + $0x158] sm:$0xff]
    %v563 = vld [vmem:[#allocation2 + $0x160] sm:$0xff]
    %v564 = vld [vmem:[#allocation2 + $0x168] sm:$0xff]
    %v565 = vld [vmem:[#allocation2 + $0x170] sm:$0xff]
    %v566 = vld [vmem:[#allocation2 + $0x178] sm:$0xff]
    %v567 = vld [vmem:[#allocation2 + $0x180] sm:$0xff]
    %v568 = vld [vmem:[#allocation2 + $0x188] sm:$0xff]
    %v569 = vld [vmem:[#allocation2 + $0x190] sm:$0xff]
    %v570 = vld [vmem:[#allocation2 + $0x198] sm:$0xff]
    %v571 = vld [vmem:[#allocation2 + $0x1a0] sm:$0xff]
    %v572 = vld [vmem:[#allocation2 + $0x1a8] sm:$0xff]
    %v573 = vld [vmem:[#allocation2 + $0x1b0] sm:$0xff]
    %v574 = vld [vmem:[#allocation2 + $0x1b8] sm:$0xff]
    %v575 = vld [vmem:[#allocation2 + $0x1c0] sm:$0xff]
    %v576 = vld [vmem:[#allocation2 + $0x1c8] sm:$0xff]
    %v577 = vld [vmem:[#allocation2 + $0x1d0] sm:$0xff]
    %v578 = vld [vmem:[#allocation2 + $0x1d8] sm:$0xff]
    %v579 = vld [vmem:[#allocation2 + $0x1e0] sm:$0xff]
    %v580 = vld [vmem:[#allocation2 + $0x1e8] sm:$0xff]
    %v581 = vld [vmem:[#allocation2 + $0x1f0] sm:$0xff]
    %v582 = vld [vmem:[#allocation2 + $0x1f8] sm:$0xff]
    %v583 = vld [vmem:[%s13] sm:$0xff]
    %v585 = vlaneseq
    %v586 = vshrl.u32 %v585, 7
    %v587 = vsub.s32 0, %v586
    %v588 = vrot.slane %v583, %v587
    %v589 = vlaneseq
    %v590 = vshrl.u32 %v589, 7
    %v591 = vsub.s32 1, %v590
    %v592 = vrot.slane %v583, %v591
    %v593 = vlaneseq
    %v594 = vshrl.u32 %v593, 7
    %v595 = vsub.s32 2, %v594
    %v596 = vrot.slane %v583, %v595
    %v597 = vlaneseq
    %v598 = vshrl.u32 %v597, 7
    %v599 = vsub.s32 3, %v598
    %v600 = vrot.slane %v583, %v599
    %v601 = vlaneseq
    %v602 = vshrl.u32 %v601, 7
    %v603 = vsub.s32 4, %v602
    %v604 = vrot.slane %v583, %v603
    %v605 = vlaneseq
    %v606 = vshrl.u32 %v605, 7
    %v607 = vsub.s32 5, %v606
    %v608 = vrot.slane %v583, %v607
    %v609 = vlaneseq
    %v610 = vshrl.u32 %v609, 7
    %v611 = vsub.s32 6, %v610
    %v612 = vrot.slane %v583, %v611
    %v613 = vlaneseq
    %v614 = vshrl.u32 %v613, 7
    %v615 = vsub.s32 7, %v614
    %v616 = vrot.slane %v583, %v615
    %v689 = vunpack.c.l.b16 %v519
    %v690 = vunpack.c.h.b16 %v519
    %v691 = vunpack.c.l.b16 %v520
    %v692 = vunpack.c.h.b16 %v520
    %v693 = vunpack.c.l.b16 %v521
    %v694 = vunpack.c.h.b16 %v521
    %v695 = vunpack.c.l.b16 %v522
    %v696 = vunpack.c.h.b16 %v522
    %v697 = vunpack.c.l.b16 %v523
    %v698 = vunpack.c.h.b16 %v523
    %v699 = vunpack.c.l.b16 %v524
    %v700 = vunpack.c.h.b16 %v524
    %v701 = vunpack.c.l.b16 %v525
    %v702 = vunpack.c.h.b16 %v525
    %v703 = vunpack.c.l.b16 %v526
    %v704 = vunpack.c.h.b16 %v526
    %v705 = vunpack.c.l.b16 %v527
    %v706 = vunpack.c.h.b16 %v527
    %v707 = vunpack.c.l.b16 %v528
    %v708 = vunpack.c.h.b16 %v528
    %v709 = vunpack.c.l.b16 %v529
    %v710 = vunpack.c.h.b16 %v529
    %v711 = vunpack.c.l.b16 %v530
    %v712 = vunpack.c.h.b16 %v530
    %v713 = vunpack.c.l.b16 %v531
    %v714 = vunpack.c.h.b16 %v531
    %v715 = vunpack.c.l.b16 %v532
    %v716 = vunpack.c.h.b16 %v532
    %v717 = vunpack.c.l.b16 %v533
    %v718 = vunpack.c.h.b16 %v533
    %v719 = vunpack.c.l.b16 %v534
    %v720 = vunpack.c.h.b16 %v534
    %v721 = vunpack.c.l.b16 %v535
    %v722 = vunpack.c.h.b16 %v535
    %v723 = vunpack.c.l.b16 %v536
    %v724 = vunpack.c.h.b16 %v536
    %v725 = vunpack.c.l.b16 %v537
    %v726 = vunpack.c.h.b16 %v537
    %v727 = vunpack.c.l.b16 %v538
    %v728 = vunpack.c.h.b16 %v538
    %v729 = vunpack.c.l.b16 %v539
    %v730 = vunpack.c.h.b16 %v539
    %v731 = vunpack.c.l.b16 %v540
    %v732 = vunpack.c.h.b16 %v540
    %v733 = vunpack.c.l.b16 %v541
    %v734 = vunpack.c.h.b16 %v541
    %v735 = vunpack.c.l.b16 %v542
    %v736 = vunpack.c.h.b16 %v542
    %v737 = vunpack.c.l.b16 %v543
    %v738 = vunpack.c.h.b16 %v543
    %v739 = vunpack.c.l.b16 %v544
    %v740 = vunpack.c.h.b16 %v544
    %v741 = vunpack.c.l.b16 %v545
    %v742 = vunpack.c.h.b16 %v545
    %v743 = vunpack.c.l.b16 %v546
    %v744 = vunpack.c.h.b16 %v546
    %v745 = vunpack.c.l.b16 %v547
    %v746 = vunpack.c.h.b16 %v547
    %v747 = vunpack.c.l.b16 %v548
    %v748 = vunpack.c.h.b16 %v548
    %v749 = vunpack.c.l.b16 %v549
    %v750 = vunpack.c.h.b16 %v549
    %v751 = vunpack.c.l.b16 %v550
    %v752 = vunpack.c.h.b16 %v550
    %v753 = vunpack.c.l.b16 %v551
    %v754 = vunpack.c.h.b16 %v551
    %v755 = vunpack.c.l.b16 %v552
    %v756 = vunpack.c.h.b16 %v552
    %v757 = vunpack.c.l.b16 %v553
    %v758 = vunpack.c.h.b16 %v553
    %v759 = vunpack.c.l.b16 %v554
    %v760 = vunpack.c.h.b16 %v554
    %v761 = vunpack.c.l.b16 %v555
    %v762 = vunpack.c.h.b16 %v555
    %v763 = vunpack.c.l.b16 %v556
    %v764 = vunpack.c.h.b16 %v556
    %v765 = vunpack.c.l.b16 %v557
    %v766 = vunpack.c.h.b16 %v557
    %v767 = vunpack.c.l.b16 %v558
    %v768 = vunpack.c.h.b16 %v558
    %v769 = vunpack.c.l.b16 %v559
    %v770 = vunpack.c.h.b16 %v559
    %v771 = vunpack.c.l.b16 %v560
    %v772 = vunpack.c.h.b16 %v560
    %v773 = vunpack.c.l.b16 %v561
    %v774 = vunpack.c.h.b16 %v561
    %v775 = vunpack.c.l.b16 %v562
    %v776 = vunpack.c.h.b16 %v562
    %v777 = vunpack.c.l.b16 %v563
    %v778 = vunpack.c.h.b16 %v563
    %v779 = vunpack.c.l.b16 %v564
    %v780 = vunpack.c.h.b16 %v564
    %v781 = vunpack.c.l.b16 %v565
    %v782 = vunpack.c.h.b16 %v565
    %v783 = vunpack.c.l.b16 %v566
    %v784 = vunpack.c.h.b16 %v566
    %v785 = vunpack.c.l.b16 %v567
    %v786 = vunpack.c.h.b16 %v567
    %v787 = vunpack.c.l.b16 %v568
    %v788 = vunpack.c.h.b16 %v568
    %v789 = vunpack.c.l.b16 %v569
    %v790 = vunpack.c.h.b16 %v569
    %v791 = vunpack.c.l.b16 %v570
    %v792 = vunpack.c.h.b16 %v570
    %v793 = vunpack.c.l.b16 %v571
    %v794 = vunpack.c.h.b16 %v571
    %v795 = vunpack.c.l.b16 %v572
    %v796 = vunpack.c.h.b16 %v572
    %v797 = vunpack.c.l.b16 %v573
    %v798 = vunpack.c.h.b16 %v573
    %v799 = vunpack.c.l.b16 %v574
    %v800 = vunpack.c.h.b16 %v574
    %v801 = vunpack.c.l.b16 %v575
    %v802 = vunpack.c.h.b16 %v575
    %v803 = vunpack.c.l.b16 %v576
    %v804 = vunpack.c.h.b16 %v576
    %v805 = vunpack.c.l.b16 %v577
    %v806 = vunpack.c.h.b16 %v577
    %v807 = vunpack.c.l.b16 %v578
    %v808 = vunpack.c.h.b16 %v578
    %v809 = vunpack.c.l.b16 %v579
    %v810 = vunpack.c.h.b16 %v579
    %v811 = vunpack.c.l.b16 %v580
    %v812 = vunpack.c.h.b16 %v580
    %v813 = vunpack.c.l.b16 %v581
    %v814 = vunpack.c.h.b16 %v581
    %v815 = vunpack.c.l.b16 %v582
    %v816 = vunpack.c.h.b16 %v582
    %v817 = vpack.c.b16 %v697, %v689
    %v818 = vpack.c.b16 %v698, %v690
    %v819 = vpack.c.b16 %v699, %v691
    %v820 = vpack.c.b16 %v700, %v692
    %v821 = vpack.c.b16 %v701, %v693
    %v822 = vpack.c.b16 %v702, %v694
    %v823 = vpack.c.b16 %v703, %v695
    %v824 = vpack.c.b16 %v704, %v696
    %v825 = vpack.c.b16 %v713, %v705
    %v826 = vpack.c.b16 %v714, %v706
    %v827 = vpack.c.b16 %v715, %v707
    %v828 = vpack.c.b16 %v716, %v708
    %v829 = vpack.c.b16 %v717, %v709
    %v830 = vpack.c.b16 %v718, %v710
    %v831 = vpack.c.b16 %v719, %v711
    %v832 = vpack.c.b16 %v720, %v712
    %v833 = vpack.c.b16 %v729, %v721
    %v834 = vpack.c.b16 %v730, %v722
    %v835 = vpack.c.b16 %v731, %v723
    %v836 = vpack.c.b16 %v732, %v724
    %v837 = vpack.c.b16 %v733, %v725
    %v838 = vpack.c.b16 %v734, %v726
    %v839 = vpack.c.b16 %v735, %v727
    %v840 = vpack.c.b16 %v736, %v728
    %v841 = vpack.c.b16 %v745, %v737
    %v842 = vpack.c.b16 %v746, %v738
    %v843 = vpack.c.b16 %v747, %v739
    %v844 = vpack.c.b16 %v748, %v740
    %v845 = vpack.c.b16 %v749, %v741
    %v846 = vpack.c.b16 %v750, %v742
    %v847 = vpack.c.b16 %v751, %v743
    %v848 = vpack.c.b16 %v752, %v744
    %v849 = vpack.c.b16 %v761, %v753
    %v850 = vpack.c.b16 %v762, %v754
    %v851 = vpack.c.b16 %v763, %v755
    %v852 = vpack.c.b16 %v764, %v756
    %v853 = vpack.c.b16 %v765, %v757
    %v854 = vpack.c.b16 %v766, %v758
    %v855 = vpack.c.b16 %v767, %v759
    %v856 = vpack.c.b16 %v768, %v760
    %v857 = vpack.c.b16 %v777, %v769
    %v858 = vpack.c.b16 %v778, %v770
    %v859 = vpack.c.b16 %v779, %v771
    %v860 = vpack.c.b16 %v780, %v772
    %v861 = vpack.c.b16 %v781, %v773
    %v862 = vpack.c.b16 %v782, %v774
    %v863 = vpack.c.b16 %v783, %v775
    %v864 = vpack.c.b16 %v784, %v776
    %v865 = vpack.c.b16 %v793, %v785
    %v866 = vpack.c.b16 %v794, %v786
    %v867 = vpack.c.b16 %v795, %v787
    %v868 = vpack.c.b16 %v796, %v788
    %v869 = vpack.c.b16 %v797, %v789
    %v870 = vpack.c.b16 %v798, %v790
    %v871 = vpack.c.b16 %v799, %v791
    %v872 = vpack.c.b16 %v800, %v792
    %v873 = vpack.c.b16 %v809, %v801
    %v874 = vpack.c.b16 %v810, %v802
    %v875 = vpack.c.b16 %v811, %v803
    %v876 = vpack.c.b16 %v812, %v804
    %v877 = vpack.c.b16 %v813, %v805
    %v878 = vpack.c.b16 %v814, %v806
    %v879 = vpack.c.b16 %v815, %v807
    %v880 = vpack.c.b16 %v816, %v808
    %945 = vmatprep.subr.bf16.mxu0 %v818
    %946 = vmatpush1.bf16.msra.mxu0 %v817
    %947 = vmatprep.subr.bf16.mxu0 %v826
    %948 = vmatpush1.bf16.msra.mxu0 %v825
    %949 = vmatprep.subr.bf16.mxu0 %v834
    %950 = vmatpush1.bf16.msra.mxu0 %v833
    %951 = vmatprep.subr.bf16.mxu0 %v842
    %952 = vmatpush1.bf16.msra.mxu0 %v841
    %953 = vmatprep.subr.bf16.mxu0 %v850
    %954 = vmatpush1.bf16.msra.mxu0 %v849
    %955 = vmatprep.subr.bf16.mxu0 %v858
    %956 = vmatpush1.bf16.msra.mxu0 %v857
    %957 = vmatprep.subr.bf16.mxu0 %v866
    %958 = vmatpush1.bf16.msra.mxu0 %v865
    %959 = vmatprep.subr.bf16.mxu0 %v874
    %960 = vmatpush1.bf16.msra.mxu0 %v873
    %961 = vmatprep.subr.bf16.mxu0 0
    %962 = vmatpush1.bf16.msra.mxu0 0
    %963 = vmatprep.subr.bf16.mxu0 0
    %964 = vmatpush1.bf16.msra.mxu0 0
    %965 = vmatprep.subr.bf16.mxu0 0
    %966 = vmatpush1.bf16.msra.mxu0 0
    %967 = vmatprep.subr.bf16.mxu0 0
    %968 = vmatpush1.bf16.msra.mxu0 0
    %969 = vmatprep.subr.bf16.mxu0 0
    %970 = vmatpush1.bf16.msra.mxu0 0
    %971 = vmatprep.subr.bf16.mxu0 0
    %972 = vmatpush1.bf16.msra.mxu0 0
    %973 = vmatprep.subr.bf16.mxu0 0
    %974 = vmatpush1.bf16.msra.mxu0 0
    %975 = vmatprep.subr.bf16.mxu0 0
    %976 = vmatpush1.bf16.msra.mxu0 0
    %977 = vmatprep.mubr.bf16.mxu0 0
    %978 = vmatmul.mubr.bf16.gmra.mrb[0].mxu0 %v272
    %v979 = vpop.f32.mrb[0].mxu0
    %v980 = vadd.f32 %v588, %v979
    %v981 = vpop.f32.mrb[0].mxu0
    %v982 = vadd.f32 %v592, %v981
    %v983 = vpop.f32.mrb[0].mxu0
    %v984 = vadd.f32 %v588, %v983
    %v985 = vpop.f32.mrb[0].mxu0
    %v986 = vadd.f32 %v592, %v985
    %987 = vdwg.mxu0
    %988 = vmatprep.subr.bf16.mxu0 %v820
    %989 = vmatpush1.bf16.msra.mxu0 %v819
    %990 = vmatprep.subr.bf16.mxu0 %v828
    %991 = vmatpush1.bf16.msra.mxu0 %v827
    %992 = vmatprep.subr.bf16.mxu0 %v836
    %993 = vmatpush1.bf16.msra.mxu0 %v835
    %994 = vmatprep.subr.bf16.mxu0 %v844
    %995 = vmatpush1.bf16.msra.mxu0 %v843
    %996 = vmatprep.subr.bf16.mxu0 %v852
    %997 = vmatpush1.bf16.msra.mxu0 %v851
    %998 = vmatprep.subr.bf16.mxu0 %v860
    %999 = vmatpush1.bf16.msra.mxu0 %v859
    %1000 = vmatprep.subr.bf16.mxu0 %v868
    %1001 = vmatpush1.bf16.msra.mxu0 %v867
    %1002 = vmatprep.subr.bf16.mxu0 %v876
    %1003 = vmatpush1.bf16.msra.mxu0 %v875
    %1004 = vmatprep.subr.bf16.mxu0 0
    %1005 = vmatpush1.bf16.msra.mxu0 0
    %1006 = vmatprep.subr.bf16.mxu0 0
    %1007 = vmatpush1.bf16.msra.mxu0 0
    %1008 = vmatprep.subr.bf16.mxu0 0
    %1009 = vmatpush1.bf16.msra.mxu0 0
    %1010 = vmatprep.subr.bf16.mxu0 0
    %1011 = vmatpush1.bf16.msra.mxu0 0
    %1012 = vmatprep.subr.bf16.mxu0 0
    %1013 = vmatpush1.bf16.msra.mxu0 0
    %1014 = vmatprep.subr.bf16.mxu0 0
    %1015 = vmatpush1.bf16.msra.mxu0 0
    %1016 = vmatprep.subr.bf16.mxu0 0
    %1017 = vmatpush1.bf16.msra.mxu0 0
    %1018 = vmatprep.subr.bf16.mxu0 0
    %1019 = vmatpush1.bf16.msra.mxu0 0
    %1020 = vmatprep.mubr.bf16.mxu0 0
    %1021 = vmatmul.mubr.bf16.gmra.mrb[0].mxu0 %v272
    %v1022 = vpop.f32.mrb[0].mxu0
    %v1023 = vadd.f32 %v596, %v1022
    %v1024 = vpop.f32.mrb[0].mxu0
    %v1025 = vadd.f32 %v600, %v1024
    %v1026 = vpop.f32.mrb[0].mxu0
    %v1027 = vadd.f32 %v596, %v1026
    %v1028 = vpop.f32.mrb[0].mxu0
    %v1029 = vadd.f32 %v600, %v1028
    %1030 = vdwg.mxu0
    %1031 = vmatprep.subr.bf16.mxu0 %v822
    %1032 = vmatpush1.bf16.msra.mxu0 %v821
    %1033 = vmatprep.subr.bf16.mxu0 %v830
    %1034 = vmatpush1.bf16.msra.mxu0 %v829
    %1035 = vmatprep.subr.bf16.mxu0 %v838
    %1036 = vmatpush1.bf16.msra.mxu0 %v837
    %1037 = vmatprep.subr.bf16.mxu0 %v846
    %1038 = vmatpush1.bf16.msra.mxu0 %v845
    %1039 = vmatprep.subr.bf16.mxu0 %v854
    %1040 = vmatpush1.bf16.msra.mxu0 %v853
    %1041 = vmatprep.subr.bf16.mxu0 %v862
    %1042 = vmatpush1.bf16.msra.mxu0 %v861
    %1043 = vmatprep.subr.bf16.mxu0 %v870
    %1044 = vmatpush1.bf16.msra.mxu0 %v869
    %1045 = vmatprep.subr.bf16.mxu0 %v878
    %1046 = vmatpush1.bf16.msra.mxu0 %v877
    %1047 = vmatprep.subr.bf16.mxu0 0
    %1048 = vmatpush1.bf16.msra.mxu0 0
    %1049 = vmatprep.subr.bf16.mxu0 0
    %1050 = vmatpush1.bf16.msra.mxu0 0
    %1051 = vmatprep.subr.bf16.mxu0 0
    %1052 = vmatpush1.bf16.msra.mxu0 0
    %1053 = vmatprep.subr.bf16.mxu0 0
    %1054 = vmatpush1.bf16.msra.mxu0 0
    %1055 = vmatprep.subr.bf16.mxu0 0
    %1056 = vmatpush1.bf16.msra.mxu0 0
    %1057 = vmatprep.subr.bf16.mxu0 0
    %1058 = vmatpush1.bf16.msra.mxu0 0
    %1059 = vmatprep.subr.bf16.mxu0 0
    %1060 = vmatpush1.bf16.msra.mxu0 0
    %1061 = vmatprep.subr.bf16.mxu0 0
    %1062 = vmatpush1.bf16.msra.mxu0 0
    %1063 = vmatprep.mubr.bf16.mxu0 0
    %1064 = vmatmul.mubr.bf16.gmra.mrb[0].mxu0 %v272
    %v1065 = vpop.f32.mrb[0].mxu0
    %v1066 = vadd.f32 %v604, %v1065
    %v1067 = vpop.f32.mrb[0].mxu0
    %v1068 = vadd.f32 %v608, %v1067
    %v1069 = vpop.f32.mrb[0].mxu0
    %v1070 = vadd.f32 %v604, %v1069
    %v1071 = vpop.f32.mrb[0].mxu0
    %v1072 = vadd.f32 %v608, %v1071
    %1073 = vdwg.mxu0
    %1074 = vmatprep.subr.bf16.mxu0 %v824
    %1075 = vmatpush1.bf16.msra.mxu0 %v823
    %1076 = vmatprep.subr.bf16.mxu0 %v832
    %1077 = vmatpush1.bf16.msra.mxu0 %v831
    %1078 = vmatprep.subr.bf16.mxu0 %v840
    %1079 = vmatpush1.bf16.msra.mxu0 %v839
    %1080 = vmatprep.subr.bf16.mxu0 %v848
    %1081 = vmatpush1.bf16.msra.mxu0 %v847
    %1082 = vmatprep.subr.bf16.mxu0 %v856
    %1083 = vmatpush1.bf16.msra.mxu0 %v855
    %1084 = vmatprep.subr.bf16.mxu0 %v864
    %1085 = vmatpush1.bf16.msra.mxu0 %v863
    %1086 = vmatprep.subr.bf16.mxu0 %v872
    %1087 = vmatpush1.bf16.msra.mxu0 %v871
    %1088 = vmatprep.subr.bf16.mxu0 %v880
    %1089 = vmatpush1.bf16.msra.mxu0 %v879
    %1090 = vmatprep.subr.bf16.mxu0 0
    %1091 = vmatpush1.bf16.msra.mxu0 0
    %1092 = vmatprep.subr.bf16.mxu0 0
    %1093 = vmatpush1.bf16.msra.mxu0 0
    %1094 = vmatprep.subr.bf16.mxu0 0
    %1095 = vmatpush1.bf16.msra.mxu0 0
    %1096 = vmatprep.subr.bf16.mxu0 0
    %1097 = vmatpush1.bf16.msra.mxu0 0
    %1098 = vmatprep.subr.bf16.mxu0 0
    %1099 = vmatpush1.bf16.msra.mxu0 0
    %1100 = vmatprep.subr.bf16.mxu0 0
    %1101 = vmatpush1.bf16.msra.mxu0 0
    %1102 = vmatprep.subr.bf16.mxu0 0
    %1103 = vmatpush1.bf16.msra.mxu0 0
    %1104 = vmatprep.subr.bf16.mxu0 0
    %1105 = vmatpush1.bf16.msra.mxu0 0
    %1106 = vmatprep.mubr.bf16.mxu0 0
    %1107 = vmatmul.mubr.bf16.gmra.mrb[0].mxu0 %v272
    %v1108 = vpop.f32.mrb[0].mxu0
    %v1109 = vadd.f32 %v612, %v1108
    %v1110 = vpop.f32.mrb[0].mxu0
    %v1111 = vadd.f32 %v616, %v1110
    %v1112 = vpop.f32.mrb[0].mxu0
    %v1113 = vadd.f32 %v612, %v1112
    %v1114 = vpop.f32.mrb[0].mxu0
    %v1115 = vadd.f32 %v616, %v1114
    %1116 = vdwg.mxu0
    %v1117 = vpack.c.bf16 %v984, %v980
    %v1118 = vpack.c.bf16 %v986, %v982
    %v1119 = vpack.c.bf16 %v1027, %v1023
    %v1120 = vpack.c.bf16 %v1029, %v1025
    %v1121 = vpack.c.bf16 %v1070, %v1066
    %v1122 = vpack.c.bf16 %v1072, %v1068
    %v1123 = vpack.c.bf16 %v1113, %v1109
    %v1124 = vpack.c.bf16 %v1115, %v1111
    %v1133 = vunpack.c.l.b16 %v1117
    %v1134 = vunpack.c.l.b16 %v1118
    %v1135 = vunpack.c.l.b16 %v1119
    %v1136 = vunpack.c.l.b16 %v1120
    %v1137 = vunpack.c.l.b16 %v1121
    %v1138 = vunpack.c.l.b16 %v1122
    %v1139 = vunpack.c.l.b16 %v1123
    %v1140 = vunpack.c.l.b16 %v1124
    %v1141 = vunpack.c.h.b16 %v1117
    %v1142 = vunpack.c.h.b16 %v1118
    %v1143 = vunpack.c.h.b16 %v1119
    %v1144 = vunpack.c.h.b16 %v1120
    %v1145 = vunpack.c.h.b16 %v1121
    %v1146 = vunpack.c.h.b16 %v1122
    %v1147 = vunpack.c.h.b16 %v1123
    %v1148 = vunpack.c.h.b16 %v1124
    %v1149 = vpack.c.b16 %v1134, %v1133
    %v1150 = vpack.c.b16 %v1136, %v1135
    %v1151 = vpack.c.b16 %v1138, %v1137
    %v1152 = vpack.c.b16 %v1140, %v1139
    %v1153 = vpack.c.b16 %v1142, %v1141
    %v1154 = vpack.c.b16 %v1144, %v1143
    %v1155 = vpack.c.b16 %v1146, %v1145
    %v1156 = vpack.c.b16 %v1148, %v1147
    %1165 = vst [vmem:[#allocation8] sm:$0xff] %v1149
    %1166 = vst [vmem:[#allocation8 + $0x8] sm:$0xff] %v1150
    %1167 = vst [vmem:[#allocation8 + $0x10] sm:$0xff] %v1151
    %1168 = vst [vmem:[#allocation8 + $0x18] sm:$0xff] %v1152
    %1169 = vst [vmem:[#allocation8 + $0x20] sm:$0xff] %v1153
    %1170 = vst [vmem:[#allocation8 + $0x28] sm:$0xff] %v1154
    %1171 = vst [vmem:[#allocation8 + $0x30] sm:$0xff] %v1155
    %1172 = vst [vmem:[#allocation8 + $0x38] sm:$0xff] %v1156
    %v1173 = vld [vmem:[%s8] sm:$0xf]
    %v1174 = vld [vmem:[%s8 + $0x4] sm:$0xf]
    %v1175 = vld [vmem:[%s8 + $0x8] sm:$0xf]
    %v1176 = vld [vmem:[%s8 + $0xc] sm:$0xf]
    %v1177 = vld [vmem:[%s8 + $0x10] sm:$0xf]
    %v1178 = vld [vmem:[%s8 + $0x14] sm:$0xf]
    %v1179 = vld [vmem:[%s8 + $0x18] sm:$0xf]
    %v1180 = vld [vmem:[%s8 + $0x1c] sm:$0xf]
    %v1181 = vld [vmem:[%s8 + $0x20] sm:$0xf]
    %v1182 = vld [vmem:[%s8 + $0x24] sm:$0xf]
    %v1183 = vld [vmem:[%s8 + $0x28] sm:$0xf]
    %v1184 = vld [vmem:[%s8 + $0x2c] sm:$0xf]
    %v1185 = vld [vmem:[%s8 + $0x30] sm:$0xf]
    %v1186 = vld [vmem:[%s8 + $0x34] sm:$0xf]
    %v1187 = vld [vmem:[%s8 + $0x38] sm:$0xf]
    %v1188 = vld [vmem:[%s8 + $0x3c] sm:$0xf]
    %v1189 = vld [vmem:[%s14] sm:$0x1]
    %v1191 = vlaneseq
    %v1192 = vshrl.u32 %v1191, 7
    %v1193 = vsub.s32 0, %v1192
    %v1194 = vrot.slane %v1189, %v1193
    %v1212 = vunpack.c.l.b16 %v1173
    %v1213 = vunpack.c.l.b16 %v1174
    %v1214 = vunpack.c.l.b16 %v1175
    %v1215 = vunpack.c.l.b16 %v1176
    %v1216 = vunpack.c.l.b16 %v1177
    %v1217 = vunpack.c.l.b16 %v1178
    %v1218 = vunpack.c.l.b16 %v1179
    %v1219 = vunpack.c.l.b16 %v1180
    %v1220 = vunpack.c.l.b16 %v1181
    %v1221 = vunpack.c.l.b16 %v1182
    %v1222 = vunpack.c.l.b16 %v1183
    %v1223 = vunpack.c.l.b16 %v1184
    %v1224 = vunpack.c.l.b16 %v1185
    %v1225 = vunpack.c.l.b16 %v1186
    %v1226 = vunpack.c.l.b16 %v1187
    %v1227 = vunpack.c.l.b16 %v1188
    %v1228 = vpack.c.b16 %v1213, %v1212
    %v1229 = vpack.c.b16 %v1215, %v1214
    %v1230 = vpack.c.b16 %v1217, %v1216
    %v1231 = vpack.c.b16 %v1219, %v1218
    %v1232 = vpack.c.b16 %v1221, %v1220
    %v1233 = vpack.c.b16 %v1223, %v1222
    %v1234 = vpack.c.b16 %v1225, %v1224
    %v1235 = vpack.c.b16 %v1227, %v1226
    %1244 = vmatprep.subr.bf16.mxu0 0
    %1245 = vmatpush1.bf16.msra.mxu0 %v1228
    %1246 = vmatprep.subr.bf16.mxu0 0
    %1247 = vmatpush1.bf16.msra.mxu0 %v1229
    %1248 = vmatprep.subr.bf16.mxu0 0
    %1249 = vmatpush1.bf16.msra.mxu0 %v1230
    %1250 = vmatprep.subr.bf16.mxu0 0
    %1251 = vmatpush1.bf16.msra.mxu0 %v1231
    %1252 = vmatprep.subr.bf16.mxu0 0
    %1253 = vmatpush1.bf16.msra.mxu0 %v1232
    %1254 = vmatprep.subr.bf16.mxu0 0
    %1255 = vmatpush1.bf16.msra.mxu0 %v1233
    %1256 = vmatprep.subr.bf16.mxu0 0
    %1257 = vmatpush1.bf16.msra.mxu0 %v1234
    %1258 = vmatprep.subr.bf16.mxu0 0
    %1259 = vmatpush1.bf16.msra.mxu0 %v1235
    %1260 = vmatprep.subr.bf16.mxu0 0
    %1261 = vmatpush1.bf16.msra.mxu0 0
    %1262 = vmatprep.subr.bf16.mxu0 0
    %1263 = vmatpush1.bf16.msra.mxu0 0
    %1264 = vmatprep.subr.bf16.mxu0 0
    %1265 = vmatpush1.bf16.msra.mxu0 0
    %1266 = vmatprep.subr.bf16.mxu0 0
    %1267 = vmatpush1.bf16.msra.mxu0 0
    %1268 = vmatprep.subr.bf16.mxu0 0
    %1269 = vmatpush1.bf16.msra.mxu0 0
    %1270 = vmatprep.subr.bf16.mxu0 0
    %1271 = vmatpush1.bf16.msra.mxu0 0
    %1272 = vmatprep.subr.bf16.mxu0 0
    %1273 = vmatpush1.bf16.msra.mxu0 0
    %1274 = vmatprep.subr.bf16.mxu0 0
    %1275 = vmatpush1.bf16.msra.mxu0 0
    %1276 = vmatprep.mubr.bf16.mxu0 0
    %1277 = vmatmul.mubr.bf16.gmra.mrb[0].mxu0 %v272
    %v1278 = vpop.f32.mrb[0].mxu0
    %v1279 = vadd.f32 %v1194, %v1278
    %v1280 = vpop.f32.mrb[0].mxu0
    %v1281 = vpop.f32.mrb[0].mxu0
    %v1282 = vadd.f32 %v1194, %v1281
    %v1283 = vpop.f32.mrb[0].mxu0
    %1284 = vdwg.mxu0
    %v1285 = vpack.c.bf16 %v1282, %v1279
    %v1287 = vunpack.c.l.b16 %v1285
    %v1288 = vunpack.c.h.b16 %v1285
    %v1289 = vpack.c.b16 %v1287, %v1287
    %v1290 = vpack.c.b16 %v1288, %v1288
    %1293 = vst.msk [vmem:[#allocation9] sm:$0xf] %vm516, %v1289
    %1294 = vst.msk [vmem:[#allocation9 + $0x4] sm:$0xf] %vm516, %v1290
    %v1295 = vld [vmem:[%s9] sm:$0xf]
    %v1296 = vld [vmem:[%s9 + $0x4] sm:$0xf]
    %v1297 = vld [vmem:[%s9 + $0x8] sm:$0xf]
    %v1298 = vld [vmem:[%s9 + $0xc] sm:$0xf]
    %v1299 = vld [vmem:[%s9 + $0x10] sm:$0xf]
    %v1300 = vld [vmem:[%s9 + $0x14] sm:$0xf]
    %v1301 = vld [vmem:[%s9 + $0x18] sm:$0xf]
    %v1302 = vld [vmem:[%s9 + $0x1c] sm:$0xf]
    %v1303 = vld [vmem:[%s9 + $0x20] sm:$0xf]
    %v1304 = vld [vmem:[%s9 + $0x24] sm:$0xf]
    %v1305 = vld [vmem:[%s9 + $0x28] sm:$0xf]
    %v1306 = vld [vmem:[%s9 + $0x2c] sm:$0xf]
    %v1307 = vld [vmem:[%s9 + $0x30] sm:$0xf]
    %v1308 = vld [vmem:[%s9 + $0x34] sm:$0xf]
    %v1309 = vld [vmem:[%s9 + $0x38] sm:$0xf]
    %v1310 = vld [vmem:[%s9 + $0x3c] sm:$0xf]
    %v1311 = vld [vmem:[%s15] sm:$0x1]
    %v1313 = vlaneseq
    %v1314 = vshrl.u32 %v1313, 7
    %v1315 = vsub.s32 0, %v1314
    %v1316 = vrot.slane %v1311, %v1315
    %v1334 = vunpack.c.l.b16 %v1295
    %v1335 = vunpack.c.l.b16 %v1296
    %v1336 = vunpack.c.l.b16 %v1297
    %v1337 = vunpack.c.l.b16 %v1298
    %v1338 = vunpack.c.l.b16 %v1299
    %v1339 = vunpack.c.l.b16 %v1300
    %v1340 = vunpack.c.l.b16 %v1301
    %v1341 = vunpack.c.l.b16 %v1302
    %v1342 = vunpack.c.l.b16 %v1303
    %v1343 = vunpack.c.l.b16 %v1304
    %v1344 = vunpack.c.l.b16 %v1305
    %v1345 = vunpack.c.l.b16 %v1306
    %v1346 = vunpack.c.l.b16 %v1307
    %v1347 = vunpack.c.l.b16 %v1308
    %v1348 = vunpack.c.l.b16 %v1309
    %v1349 = vunpack.c.l.b16 %v1310
    %v1350 = vpack.c.b16 %v1335, %v1334
    %v1351 = vpack.c.b16 %v1337, %v1336
    %v1352 = vpack.c.b16 %v1339, %v1338
    %v1353 = vpack.c.b16 %v1341, %v1340
    %v1354 = vpack.c.b16 %v1343, %v1342
    %v1355 = vpack.c.b16 %v1345, %v1344
    %v1356 = vpack.c.b16 %v1347, %v1346
    %v1357 = vpack.c.b16 %v1349, %v1348
    %1366 = vmatprep.subr.bf16.mxu0 0
    %1367 = vmatpush1.bf16.msra.mxu0 %v1350
    %1368 = vmatprep.subr.bf16.mxu0 0
    %1369 = vmatpush1.bf16.msra.mxu0 %v1351
    %1370 = vmatprep.subr.bf16.mxu0 0
    %1371 = vmatpush1.bf16.msra.mxu0 %v1352
    %1372 = vmatprep.subr.bf16.mxu0 0
    %1373 = vmatpush1.bf16.msra.mxu0 %v1353
    %1374 = vmatprep.subr.bf16.mxu0 0
    %1375 = vmatpush1.bf16.msra.mxu0 %v1354
    %1376 = vmatprep.subr.bf16.mxu0 0
    %1377 = vmatpush1.bf16.msra.mxu0 %v1355
    %1378 = vmatprep.subr.bf16.mxu0 0
    %1379 = vmatpush1.bf16.msra.mxu0 %v1356
    %1380 = vmatprep.subr.bf16.mxu0 0
    %1381 = vmatpush1.bf16.msra.mxu0 %v1357
    %1382 = vmatprep.subr.bf16.mxu0 0
    %1383 = vmatpush1.bf16.msra.mxu0 0
    %1384 = vmatprep.subr.bf16.mxu0 0
    %1385 = vmatpush1.bf16.msra.mxu0 0
    %1386 = vmatprep.subr.bf16.mxu0 0
    %1387 = vmatpush1.bf16.msra.mxu0 0
    %1388 = vmatprep.subr.bf16.mxu0 0
    %1389 = vmatpush1.bf16.msra.mxu0 0
    %1390 = vmatprep.subr.bf16.mxu0 0
    %1391 = vmatpush1.bf16.msra.mxu0 0
    %1392 = vmatprep.subr.bf16.mxu0 0
    %1393 = vmatpush1.bf16.msra.mxu0 0
    %1394 = vmatprep.subr.bf16.mxu0 0
    %1395 = vmatpush1.bf16.msra.mxu0 0
    %1396 = vmatprep.subr.bf16.mxu0 0
    %1397 = vmatpush1.bf16.msra.mxu0 0
    %1398 = vmatprep.mubr.bf16.mxu0 0
    %1399 = vmatmul.mubr.bf16.gmra.mrb[0].mxu0 %v272
    %v1400 = vpop.f32.mrb[0].mxu0
    %v1401 = vadd.f32 %v1316, %v1400
    %v1402 = vpop.f32.mrb[0].mxu0
    %v1403 = vpop.f32.mrb[0].mxu0
    %v1404 = vadd.f32 %v1316, %v1403
    %v1405 = vpop.f32.mrb[0].mxu0
    %1406 = vdwg.mxu0
    %v1407 = vpack.c.bf16 %v1404, %v1401
    %v1409 = vunpack.c.l.b16 %v1407
    %v1410 = vunpack.c.h.b16 %v1407
    %v1411 = vpack.c.b16 %v1409, %v1409
    %v1412 = vpack.c.b16 %v1410, %v1410
    %vm1415 = vcmask 781312
    %1416 = vst.msk [vmem:[#allocation11] sm:$0xf] %vm1415, %v1411
    %1417 = vst.msk [vmem:[#allocation11 + $0x4] sm:$0xf] %vm1415, %v1412
    %v1418 = vld [vmem:[%s10] sm:$0xf]
    %v1419 = vld [vmem:[%s10 + $0x4] sm:$0xf]
    %v1420 = vld [vmem:[%s10 + $0x8] sm:$0xf]
    %v1421 = vld [vmem:[%s10 + $0xc] sm:$0xf]
    %v1422 = vld [vmem:[%s10 + $0x10] sm:$0xf]
    %v1423 = vld [vmem:[%s10 + $0x14] sm:$0xf]
    %v1424 = vld [vmem:[%s10 + $0x18] sm:$0xf]
    %v1425 = vld [vmem:[%s10 + $0x1c] sm:$0xf]
    %v1426 = vld [vmem:[%s10 + $0x20] sm:$0xf]
    %v1427 = vld [vmem:[%s10 + $0x24] sm:$0xf]
    %v1428 = vld [vmem:[%s10 + $0x28] sm:$0xf]
    %v1429 = vld [vmem:[%s10 + $0x2c] sm:$0xf]
    %v1430 = vld [vmem:[%s10 + $0x30] sm:$0xf]
    %v1431 = vld [vmem:[%s10 + $0x34] sm:$0xf]
    %v1432 = vld [vmem:[%s10 + $0x38] sm:$0xf]
    %v1433 = vld [vmem:[%s10 + $0x3c] sm:$0xf]
    %v1434 = vld [vmem:[%s16] sm:$0x1]
    %v1436 = vlaneseq
    %v1437 = vshrl.u32 %v1436, 7
    %v1438 = vsub.s32 0, %v1437
    %v1439 = vrot.slane %v1434, %v1438
    %v1457 = vunpack.c.l.b16 %v1418
    %v1458 = vunpack.c.l.b16 %v1419
    %v1459 = vunpack.c.l.b16 %v1420
    %v1460 = vunpack.c.l.b16 %v1421
    %v1461 = vunpack.c.l.b16 %v1422
    %v1462 = vunpack.c.l.b16 %v1423
    %v1463 = vunpack.c.l.b16 %v1424
    %v1464 = vunpack.c.l.b16 %v1425
    %v1465 = vunpack.c.l.b16 %v1426
    %v1466 = vunpack.c.l.b16 %v1427
    %v1467 = vunpack.c.l.b16 %v1428
    %v1468 = vunpack.c.l.b16 %v1429
    %v1469 = vunpack.c.l.b16 %v1430
    %v1470 = vunpack.c.l.b16 %v1431
    %v1471 = vunpack.c.l.b16 %v1432
    %v1472 = vunpack.c.l.b16 %v1433
    %v1473 = vpack.c.b16 %v1458, %v1457
    %v1474 = vpack.c.b16 %v1460, %v1459
    %v1475 = vpack.c.b16 %v1462, %v1461
    %v1476 = vpack.c.b16 %v1464, %v1463
    %v1477 = vpack.c.b16 %v1466, %v1465
    %v1478 = vpack.c.b16 %v1468, %v1467
    %v1479 = vpack.c.b16 %v1470, %v1469
    %v1480 = vpack.c.b16 %v1472, %v1471
    %1489 = vmatprep.subr.bf16.mxu0 0
    %1490 = vmatpush1.bf16.msra.mxu0 %v1473
    %1491 = vmatprep.subr.bf16.mxu0 0
    %1492 = vmatpush1.bf16.msra.mxu0 %v1474
    %1493 = vmatprep.subr.bf16.mxu0 0
    %1494 = vmatpush1.bf16.msra.mxu0 %v1475
    %1495 = vmatprep.subr.bf16.mxu0 0
    %1496 = vmatpush1.bf16.msra.mxu0 %v1476
    %1497 = vmatprep.subr.bf16.mxu0 0
    %1498 = vmatpush1.bf16.msra.mxu0 %v1477
    %1499 = vmatprep.subr.bf16.mxu0 0
    %1500 = vmatpush1.bf16.msra.mxu0 %v1478
    %1501 = vmatprep.subr.bf16.mxu0 0
    %1502 = vmatpush1.bf16.msra.mxu0 %v1479
    %1503 = vmatprep.subr.bf16.mxu0 0
    %1504 = vmatpush1.bf16.msra.mxu0 %v1480
    %1505 = vmatprep.subr.bf16.mxu0 0
    %1506 = vmatpush1.bf16.msra.mxu0 0
    %1507 = vmatprep.subr.bf16.mxu0 0
    %1508 = vmatpush1.bf16.msra.mxu0 0
    %1509 = vmatprep.subr.bf16.mxu0 0
    %1510 = vmatpush1.bf16.msra.mxu0 0
    %1511 = vmatprep.subr.bf16.mxu0 0
    %1512 = vmatpush1.bf16.msra.mxu0 0
    %1513 = vmatprep.subr.bf16.mxu0 0
    %1514 = vmatpush1.bf16.msra.mxu0 0
    %1515 = vmatprep.subr.bf16.mxu0 0
    %1516 = vmatpush1.bf16.msra.mxu0 0
    %1517 = vmatprep.subr.bf16.mxu0 0
    %1518 = vmatpush1.bf16.msra.mxu0 0
    %1519 = vmatprep.subr.bf16.mxu0 0
    %1520 = vmatpush1.bf16.msra.mxu0 0
    %1521 = vmatprep.mubr.bf16.mxu0 0
    %1522 = vmatmul.mubr.bf16.gmra.mrb[0].mxu0 %v272
    %v1523 = vpop.f32.mrb[0].mxu0
    %v1524 = vadd.f32 %v1439, %v1523
    %v1525 = vpop.f32.mrb[0].mxu0
    %v1526 = vpop.f32.mrb[0].mxu0
    %v1527 = vadd.f32 %v1439, %v1526
    %v1528 = vpop.f32.mrb[0].mxu0
    %1529 = vdwg.mxu0
    %v1530 = vpack.c.bf16 %v1527, %v1524
    %v1532 = vunpack.c.l.b16 %v1530
    %v1533 = vunpack.c.h.b16 %v1530
    %v1534 = vpack.c.b16 %v1532, %v1532
    %v1535 = vpack.c.b16 %v1533, %v1533
    %vm1538 = vcmask 19456
    %1539 = vst.msk [vmem:[%s22] sm:$0xf] %vm1538, %v1534
    %1540 = vst.msk [vmem:[%s22 + $0x4] sm:$0xf] %vm1538, %v1535
    // Predicated region
    $region74: #{tpu_custom_call.1} parent=1 // pred_check
      _
    $region75: #{tpu_custom_call.1} parent=1 // pred_check_branch
      %1542 = sbr.rel (0) target = $region77
    $region76: #{tpu_custom_call.1} parent=1 // pred_region
      %s1544 = ssub.s32 128, 128
      %1545 = vsyncadd [#allocation4], %s1544
      %s1546 = sshll.u32 [#allocation5], 4
      %s1547 = int_to_ptr.vmem [resolvable:$true] %s1546
      %1552 = dma.vmem_to_hbm [thread:$0]  %s1547, 128, %s17, [#allocation4], 64, 64, 4
    $region77: #{tpu_custom_call.1} parent=1 // pred_fallthru
      _
    // Predicated region
    $region78: #{tpu_custom_call.1} parent=1 // pred_check
      _
    $region79: #{tpu_custom_call.1} parent=1 // pred_check_branch
      %1554 = sbr.rel (0) target = $region81
    $region80: #{tpu_custom_call.1} parent=1 // pred_region
      %s1556 = ssub.s32 128, 128
      %1557 = vsyncadd [#allocation7], %s1556
      %s1558 = sshll.u32 [#allocation6], 4
      %s1559 = int_to_ptr.vmem [resolvable:$true] %s1558
      %1564 = dma.vmem_to_hbm [thread:$0]  %s1559, 128, %s18, [#allocation7], 64, 64, 4
    $region81: #{tpu_custom_call.1} parent=1 // pred_fallthru
      _
    // Predicated region
    $region82: #{tpu_custom_call.1} parent=1 // pred_check
      _
    $region83: #{tpu_custom_call.1} parent=1 // pred_check_branch
      %1566 = sbr.rel (0) target = $region85
    $region84: #{tpu_custom_call.1} parent=1 // pred_region
      %s1568 = ssub.s32 1024, 1024
      %1569 = vsyncadd [#allocation7], %s1568
      %s1570 = sshll.u32 [#allocation8], 4
      %s1571 = int_to_ptr.vmem [resolvable:$true] %s1570
      %1576 = dma.vmem_to_hbm [thread:$0]  %s1571, 1024, %s19, [#allocation7], 512, 512, 32
    $region85: #{tpu_custom_call.1} parent=1 // pred_fallthru
      _
    // Predicated region
    $region86: #{tpu_custom_call.1} parent=1 // pred_check
      _
    $region87: #{tpu_custom_call.1} parent=1 // pred_check_branch
      %1578 = sbr.rel (0) target = $region89
    $region88: #{tpu_custom_call.1} parent=1 // pred_region
      %s1580 = ssub.s32 128, 128
      %1581 = vsyncadd [#allocation10], %s1580
      %s1582 = sshll.u32 [#allocation9], 4
      %s1583 = int_to_ptr.vmem [resolvable:$true] %s1582
      %1588 = dma.vmem_to_hbm [thread:$0]  %s1583, 128, %s20, [#allocation10], 64, 64, 4
    $region89: #{tpu_custom_call.1} parent=1 // pred_fallthru
      _
    // Predicated region
    $region90: #{tpu_custom_call.1} parent=1 // pred_check
      _
    $region91: #{tpu_custom_call.1} parent=1 // pred_check_branch
      %1590 = sbr.rel (0) target = $region93
    $region92: #{tpu_custom_call.1} parent=1 // pred_region
      %s1592 = ssub.s32 128, 128
      %1593 = vsyncadd [#allocation10], %s1592
      %s1594 = sshll.u32 [#allocation11], 4
      %s1595 = int_to_ptr.vmem [resolvable:$true] %s1594
      %1600 = dma.vmem_to_hbm [thread:$0]  %s1595, 128, %s21, [#allocation10], 64, 64, 4
    $region93: #{tpu_custom_call.1} parent=1 // pred_fallthru
      _
    // Predicated region
    $region94: #{tpu_custom_call.1} parent=1 // pred_check
      _
    $region95: #{tpu_custom_call.1} parent=1 // pred_check_branch
      %1602 = sbr.rel (0) target = $region97
    $region96: #{tpu_custom_call.1} parent=1 // pred_region
      _
    $region97: #{tpu_custom_call.1} parent=1 // pred_fallthru
      _
    // Predicated region
    $region98: #{tpu_custom_call.1} parent=1 // pred_check
      _
    $region99: #{tpu_custom_call.1} parent=1 // pred_check_branch
      %1604 = sbr.rel (0) target = $region101
    $region100: #{tpu_custom_call.1} parent=1 // pred_region
      %1605 = dma.done [#allocation4], 128
    $region101: #{tpu_custom_call.1} parent=1 // pred_fallthru
      _
    // Predicated region
    $region102: #{tpu_custom_call.1} parent=1 // pred_check
      _
    $region103: #{tpu_custom_call.1} parent=1 // pred_check_branch
      %1607 = sbr.rel (0) target = $region105
    $region104: #{tpu_custom_call.1} parent=1 // pred_region
      %1608 = dma.done [#allocation7], 128
    $region105: #{tpu_custom_call.1} parent=1 // pred_fallthru
      _
    // Predicated region
    $region106: #{tpu_custom_call.1} parent=1 // pred_check
      _
    $region107: #{tpu_custom_call.1} parent=1 // pred_check_branch
      %1610 = sbr.rel (0) target = $region109
    $region108: #{tpu_custom_call.1} parent=1 // pred_region
      %1611 = dma.done [#allocation7], 1024
    $region109: #{tpu_custom_call.1} parent=1 // pred_fallthru
      _
    // Predicated region
    $region110: #{tpu_custom_call.1} parent=1 // pred_check
      _
    $region111: #{tpu_custom_call.1} parent=1 // pred_check_branch
      %1613 = sbr.rel (0) target = $region113
    $region112: #{tpu_custom_call.1} parent=1 // pred_region
      %1614 = dma.done [#allocation10], 128
    $region113: #{tpu_custom_call.1} parent=1 // pred_fallthru
      _
    // Predicated region
    $region114: #{tpu_custom_call.1} parent=1 // pred_check
      _
    $region115: #{tpu_custom_call.1} parent=1 // pred_check_branch
      %1616 = sbr.rel (0) target = $region117
    $region116: #{tpu_custom_call.1} parent=1 // pred_region
      %1617 = dma.done [#allocation10], 128
    $region117: #{tpu_custom_call.1} parent=1 // pred_fallthru
      _
    // Predicated region
    $region118: #{tpu_custom_call.1} parent=1 // pred_check
      _
    $region119: #{tpu_custom_call.1} parent=1 // pred_check_branch
      %1619 = sbr.rel (0) target = $region121
    $region120: #{tpu_custom_call.1} parent=1 // pred_region
      _
    $region121: #{tpu_custom_call.1} parent=1 // pred_fallthru
      _
    %1620 = vsyncpa [#allocation3], 1
    %1621 = vsyncpa [#allocation4], 1
    %1622 = vsyncpa [#allocation7], 1
    %1623 = vsyncpa [#allocation10], 1

</llo_original>
